<compile_context>
chip_gen: v7x
topology: tpu7x:2x2x1
jax: 0.10.0
libtpu: 0.0.40
codegen_flags: <defaults>
</compile_context>

<pallas_src>
import functools

import jax
import jax.numpy as jnp
import numpy as np
from jax.experimental import pallas as pl
from jax.experimental.pallas import tpu as pltpu

K = 4  # kernel size of the transposed conv (fixed by the module)

# For output row-phase a, the contributing (padded-row-offset, kernel-row) pairs.
# The same table applies to columns / phase b.
#   out[2q + 0] = x[q]   * W[ky=1] + x[q-1] * W[ky=3]
#   out[2q + 1] = x[q]   * W[ky=2] + x[q+1] * W[ky=0]
# (padded index = raw index + 1 because of the zero pad of 1 on each side)
_TAPS = {0: [(0, 3), (1, 1)], 1: [(1, 2), (2, 0)]}


def _upsample_kernel(x_ref, w_ref, b_ref, o_ref, *, tq, w, cout):
    """One (batch x row-tile) step.

    x_ref: (1, MP, Cin)        flattened padded input rows of this tile,
                               MP = (tq + 3) * (w + 2)
    w_ref: (Cin, 16 * cout)    packed sub-kernels, tap-major (t = ky * 4 + kx), resident
    b_ref: (1, cout)           bias, resident
    o_ref: (1, tq*(w+2), 4*cout)  phase-packed output; the last 2 columns of every
                                  spatial row are junk and dropped by the wrapper.
    """
    wp2 = w + 2
    length = tq * wp2

    # Single wide matmul: every input element is touched exactly once by the MXU.
    z = jnp.dot(x_ref[0], w_ref[...],
                preferred_element_type=jnp.float32)            # (MP, 16*cout), f32

    bias = b_ref[...]                                          # (1, cout)

    # Overlap-add the 16 taps into the 4 output phases (VPU work on VMEM data).
    for a in range(2):
        for b in range(2):
            acc = None
            for (oy, ky) in _TAPS[a]:
                for (ox, kx) in _TAPS[b]:
                    t = ky * 4 + kx                            # tap column block
                    d = oy * wp2 + ox                          # flattened spatial shift
                    blk = z[d:d + length, t * cout:(t + 1) * cout]   # (L, cout)
                    acc = blk if acc is None else acc + blk
            p = a * 2 + b
            out = jnp.maximum(acc + bias, 0.0)
            o_ref[0, :, p * cout:(p + 1) * cout] = out.astype(o_ref.dtype)


def _pick_row_tile(h, w, cin, cout, budget_bytes=8 * 1024 * 1024):
    """Largest divisor of H whose per-step working set fits a conservative VMEM budget.

    Budget is deliberately well below the v7x scoped-VMEM default (32 MiB of 64 MiB
    physical) so the same tile choice is safe on v5e / v6e / v7x.
    """
    for tq in range(h, 0, -1):
        if h % tq:
            continue
        mp = (tq + 3) * (w + 2)
        length = tq * (w + 2)
        bytes_per_step = 4 * (2 * mp * cin            # double-buffered input tile
                              + 2 * length * 4 * cout  # double-buffered output tile
                              + mp * 16 * cout)        # Z intermediate (f32)
        if bytes_per_step <= budget_bytes:
            return tq
    return 1


def upsample_forward(x_nchw, weight, bias, drop_rate=0.0, compute_dtype=jnp.float32):
    """ConvTranspose2d(Cin, Cout, 4, stride=2, padding=1) + Dropout2d(eval) + ReLU.

    x_nchw : (N, Cin, H, W)      float32
    weight : (Cin, Cout, 4, 4)   float32   (PyTorch ConvTranspose2d layout)
    bias   : (Cout,)             float32
    returns: (N, Cout, 2H, 2W)   float32
    """
    del drop_rate  # identity in eval mode
    N, Cin, H, W = x_nchw.shape
    Cout = weight.shape[1]

    TQ = _pick_row_tile(H, W, Cin, Cout)
    T = H // TQ
    MP = (TQ + 3) * (W + 2)          # padded rows per tile (+1 guard row for col wrap)
    L = TQ * (W + 2)                 # output rows per tile (flattened, W+2 cols incl. junk)

    # --- glue: NCHW -> padded NHWC row tiles (input body is written/read ~once) ---
    x = jnp.transpose(x_nchw, (0, 2, 3, 1))                       # NHWC
    xpad = jnp.pad(x, ((0, 0), (1, 2), (1, 1), (0, 0)))           # (N, H+3, W+2, Cin)
    tiles = [xpad[:, t * TQ:t * TQ + TQ + 3] for t in range(T)]   # 2-row halo + 1 guard
    x_tiled = jnp.stack(tiles, axis=1).reshape(N * T, MP, Cin)
    x_tiled = x_tiled.astype(compute_dtype)

    # Packed sub-kernels: wp[cin, (ky*4+kx)*Cout + c] = weight[cin, c, ky, kx]
    wp = jnp.transpose(weight, (0, 2, 3, 1)).reshape(Cin, 16 * Cout).astype(compute_dtype)
    bias2 = bias.astype(jnp.float32).reshape(1, Cout)

    kernel = functools.partial(_upsample_kernel, tq=TQ, w=W, cout=Cout)
    out_packed = pl.pallas_call(
        kernel,
        out_shape=jax.ShapeDtypeStruct((N * T, L, 4 * Cout), jnp.float32),
        grid=(N * T,),
        in_specs=[
            pl.BlockSpec((1, MP, Cin), lambda i: (i, 0, 0)),        # input tile
            pl.BlockSpec((Cin, 16 * Cout), lambda i: (0, 0)),       # resident weights
            pl.BlockSpec((1, Cout), lambda i: (0, 0)),              # resident bias
        ],
        out_specs=pl.BlockSpec((1, L, 4 * Cout), lambda i: (i, 0, 0)),
        compiler_params=pltpu.CompilerParams(
            dimension_semantics=("parallel",),
            vmem_limit_bytes=32 * 1024 * 1024),
    )(x_tiled, wp, bias2)

    # --- glue: phase-packed -> pixel shuffle -> NCHW (module contract) ---
    out = out_packed.reshape(N, T, TQ, W + 2, 2, 2, Cout)         # [n, t, q, r, a, b, c]
    out = out[:, :, :, :W]                                        # drop junk columns
    out = jnp.transpose(out, (0, 1, 2, 4, 3, 5, 6))               # [n, t, q, a, r, b, c]
    out = out.reshape(N, 2 * H, 2 * W, Cout)                      # NHWC
    return jnp.transpose(out, (0, 3, 1, 2))                       # NCHW


def _reference(x_nchw, weight, bias):
    # ConvTranspose2d(k=4,s=2,p=1) == conv with lhs_dilation=2, pad=k-1-p=2, flipped kernel.
    w_conv = jnp.flip(weight, axis=(2, 3)).transpose(1, 0, 2, 3)   # (Cout, Cin, 4, 4)
    y = jax.lax.conv_general_dilated(
        x_nchw, w_conv, window_strides=(1, 1), padding=[(2, 2), (2, 2)],
        lhs_dilation=(2, 2), dimension_numbers=("NCHW", "OIHW", "NCHW"))
    y = y + bias.reshape(1, -1, 1, 1)
    return jnp.maximum(y, 0.0)


if __name__ == "__main__":
    key = jax.random.PRNGKey(0)
    k1, k2, k3 = jax.random.split(key, 3)

    N, Cin, Cout, H, W = 2, 4, 4, 16, 16
    x = jax.random.normal(k1, (N, Cin, H, W), dtype=jnp.float32)
    weight = jax.random.normal(k2, (Cin, Cout, K, K), dtype=jnp.float32) * 0.1
    bias = jax.random.normal(k3, (Cout,), dtype=jnp.float32) * 0.1

    # f32 path (exact check against the XLA reference).
    y = upsample_forward(x, weight, bias, drop_rate=0.1)
    jax.block_until_ready(y)
    assert y.shape == (N, Cout, 2 * H, 2 * W), y.shape
    y_ref = _reference(x, weight, bias)
    np.testing.assert_allclose(np.asarray(y), np.asarray(y_ref), rtol=1e-4, atol=1e-4)

    # bf16 compute path (halves HBM read traffic; f32 MXU accumulation) — sanity check.
    y_bf16 = upsample_forward(x, weight, bias, compute_dtype=jnp.bfloat16)
    jax.block_until_ready(y_bf16)
    np.testing.assert_allclose(np.asarray(y_bf16), np.asarray(y_ref), rtol=2e-1, atol=2e-1)

    print("KERNEL_OK")
</pallas_src>

<mosaic_0001>
module attributes {stable_mosaic.version = 11 : i64} {
  func.func @_upsample_kernel(%arg0: i32, %arg1: memref<1x342x4xf32, #tpu.memory_space<vmem>>, %arg2: memref<4x64xf32, #tpu.memory_space<vmem>>, %arg3: memref<1x4xf32, #tpu.memory_space<vmem>>, %arg4: memref<1x288x16xf32, #tpu.memory_space<vmem>>) attributes {dimension_semantics = [#tpu.dimension_semantics<parallel>], iteration_bounds = array<i64: 2>, scalar_prefetch = 0 : i64, scratch_operands = 0 : i64, tpu.core_type = #tpu.core_type<tc>, window_params = [{transform_indices = @transform_0, window_bounds = array<i64: 1, 342, 4>}, {pipeline_mode = #tpu.pipeline_mode<synchronous>, transform_indices = @transform_1, window_bounds = array<i64: 4, 64>}, {pipeline_mode = #tpu.pipeline_mode<synchronous>, transform_indices = @transform_2, window_bounds = array<i64: 1, 4>}, {transform_indices = @transform_3, window_bounds = array<i64: 1, 288, 16>}]} {
    %c0 = arith.constant 0 : index
    %c0_0 = arith.constant 0 : index
    %c0_1 = arith.constant 0 : index
    %0 = vector.load %arg1[%c0, %c0_0, %c0_1] : memref<1x342x4xf32, #tpu.memory_space<vmem>>, vector<1x342x4xf32>
    %1 = vector.shape_cast %0 : vector<1x342x4xf32> to vector<342x4xf32>
    %c0_2 = arith.constant 0 : index
    %c0_3 = arith.constant 0 : index
    %2 = vector.load %arg2[%c0_2, %c0_3] : memref<4x64xf32, #tpu.memory_space<vmem>>, vector<4x64xf32>
    %cst = arith.constant dense<0.000000e+00> : vector<342x64xf32>
    %3 = tpu.matmul %1, %2, %cst {dimension_numbers = #tpu.dot_dimension_numbers<[1], [0], [0], [1], [0, 0, 1, 1], [], []>} : vector<342x4xf32>, vector<4x64xf32>, vector<342x64xf32> -> vector<342x64xf32>
    %c0_4 = arith.constant 0 : index
    %c0_5 = arith.constant 0 : index
    %4 = vector.load %arg3[%c0_4, %c0_5] : memref<1x4xf32, #tpu.memory_space<vmem>>, vector<1x4xf32>
    %5 = vector.extract_strided_slice %3 {offsets = [0, 60], sizes = [288, 4], strides = [1, 1]} : vector<342x64xf32> to vector<288x4xf32>
    %6 = vector.extract_strided_slice %3 {offsets = [1, 52], sizes = [288, 4], strides = [1, 1]} : vector<342x64xf32> to vector<288x4xf32>
    %7 = arith.addf %5, %6 : vector<288x4xf32>
    %8 = vector.extract_strided_slice %3 {offsets = [18, 28], sizes = [288, 4], strides = [1, 1]} : vector<342x64xf32> to vector<288x4xf32>
    %9 = arith.addf %7, %8 : vector<288x4xf32>
    %10 = vector.extract_strided_slice %3 {offsets = [19, 20], sizes = [288, 4], strides = [1, 1]} : vector<342x64xf32> to vector<288x4xf32>
    %11 = arith.addf %9, %10 : vector<288x4xf32>
    %12 = vector.broadcast %4 : vector<1x4xf32> to vector<288x4xf32>
    %13 = arith.addf %11, %12 : vector<288x4xf32>
    %cst_6 = arith.constant 0.000000e+00 : f32
    %14 = vector.broadcast %cst_6 : f32 to vector<288x4xf32>
    %15 = arith.maximumf %13, %14 : vector<288x4xf32>
    %c0_7 = arith.constant 0 : index
    %c0_8 = arith.constant 0 : index
    %c0_9 = arith.constant 0 : index
    %16 = vector.load %arg4[%c0_7, %c0_8, %c0_9] : memref<1x288x16xf32, #tpu.memory_space<vmem>>, vector<1x288x4xf32>
    %17 = vector.shape_cast %16 : vector<1x288x4xf32> to vector<288x4xf32>
    %18 = vector.shape_cast %15 : vector<288x4xf32> to vector<1x288x4xf32>
    tpu.vector_store %arg4[%c0_7, %c0_8, %c0_9], %18 {strides = array<i32>} : memref<1x288x16xf32, #tpu.memory_space<vmem>>, vector<1x288x4xf32>,
    %19 = vector.extract_strided_slice %3 {offsets = [1, 56], sizes = [288, 4], strides = [1, 1]} : vector<342x64xf32> to vector<288x4xf32>
    %20 = vector.extract_strided_slice %3 {offsets = [2, 48], sizes = [288, 4], strides = [1, 1]} : vector<342x64xf32> to vector<288x4xf32>
    %21 = arith.addf %19, %20 : vector<288x4xf32>
    %22 = vector.extract_strided_slice %3 {offsets = [19, 24], sizes = [288, 4], strides = [1, 1]} : vector<342x64xf32> to vector<288x4xf32>
    %23 = arith.addf %21, %22 : vector<288x4xf32>
    %24 = vector.extract_strided_slice %3 {offsets = [20, 16], sizes = [288, 4], strides = [1, 1]} : vector<342x64xf32> to vector<288x4xf32>
    %25 = arith.addf %23, %24 : vector<288x4xf32>
    %26 = vector.broadcast %4 : vector<1x4xf32> to vector<288x4xf32>
    %27 = arith.addf %25, %26 : vector<288x4xf32>
    %cst_10 = arith.constant 0.000000e+00 : f32
    %28 = vector.broadcast %cst_10 : f32 to vector<288x4xf32>
    %29 = arith.maximumf %27, %28 : vector<288x4xf32>
    %c0_11 = arith.constant 0 : index
    %c0_12 = arith.constant 0 : index
    %c4 = arith.constant 4 : index
    %30 = vector.load %arg4[%c0_11, %c0_12, %c4] : memref<1x288x16xf32, #tpu.memory_space<vmem>>, vector<1x288x4xf32>
    %31 = vector.shape_cast %30 : vector<1x288x4xf32> to vector<288x4xf32>
    %32 = vector.shape_cast %29 : vector<288x4xf32> to vector<1x288x4xf32>
    tpu.vector_store %arg4[%c0_11, %c0_12, %c4], %32 {strides = array<i32>} : memref<1x288x16xf32, #tpu.memory_space<vmem>>, vector<1x288x4xf32>,
    %33 = vector.extract_strided_slice %3 {offsets = [18, 44], sizes = [288, 4], strides = [1, 1]} : vector<342x64xf32> to vector<288x4xf32>
    %34 = vector.extract_strided_slice %3 {offsets = [19, 36], sizes = [288, 4], strides = [1, 1]} : vector<342x64xf32> to vector<288x4xf32>
    %35 = arith.addf %33, %34 : vector<288x4xf32>
    %36 = vector.extract_strided_slice %3 {offsets = [36, 12], sizes = [288, 4], strides = [1, 1]} : vector<342x64xf32> to vector<288x4xf32>
    %37 = arith.addf %35, %36 : vector<288x4xf32>
    %38 = vector.extract_strided_slice %3 {offsets = [37, 4], sizes = [288, 4], strides = [1, 1]} : vector<342x64xf32> to vector<288x4xf32>
    %39 = arith.addf %37, %38 : vector<288x4xf32>
    %40 = vector.broadcast %4 : vector<1x4xf32> to vector<288x4xf32>
    %41 = arith.addf %39, %40 : vector<288x4xf32>
    %cst_13 = arith.constant 0.000000e+00 : f32
    %42 = vector.broadcast %cst_13 : f32 to vector<288x4xf32>
    %43 = arith.maximumf %41, %42 : vector<288x4xf32>
    %c0_14 = arith.constant 0 : index
    %c0_15 = arith.constant 0 : index
    %c8 = arith.constant 8 : index
    %44 = vector.load %arg4[%c0_14, %c0_15, %c8] : memref<1x288x16xf32, #tpu.memory_space<vmem>>, vector<1x288x4xf32>
    %45 = vector.shape_cast %44 : vector<1x288x4xf32> to vector<288x4xf32>
    %46 = vector.shape_cast %43 : vector<288x4xf32> to vector<1x288x4xf32>
    tpu.vector_store %arg4[%c0_14, %c0_15, %c8], %46 {strides = array<i32>} : memref<1x288x16xf32, #tpu.memory_space<vmem>>, vector<1x288x4xf32>,
    %47 = vector.extract_strided_slice %3 {offsets = [19, 40], sizes = [288, 4], strides = [1, 1]} : vector<342x64xf32> to vector<288x4xf32>
    %48 = vector.extract_strided_slice %3 {offsets = [20, 32], sizes = [288, 4], strides = [1, 1]} : vector<342x64xf32> to vector<288x4xf32>
    %49 = arith.addf %47, %48 : vector<288x4xf32>
    %50 = vector.extract_strided_slice %3 {offsets = [37, 8], sizes = [288, 4], strides = [1, 1]} : vector<342x64xf32> to vector<288x4xf32>
    %51 = arith.addf %49, %50 : vector<288x4xf32>
    %52 = vector.extract_strided_slice %3 {offsets = [38, 0], sizes = [288, 4], strides = [1, 1]} : vector<342x64xf32> to vector<288x4xf32>
    %53 = arith.addf %51, %52 : vector<288x4xf32>
    %54 = vector.broadcast %4 : vector<1x4xf32> to vector<288x4xf32>
    %55 = arith.addf %53, %54 : vector<288x4xf32>
    %cst_16 = arith.constant 0.000000e+00 : f32
    %56 = vector.broadcast %cst_16 : f32 to vector<288x4xf32>
    %57 = arith.maximumf %55, %56 : vector<288x4xf32>
    %c0_17 = arith.constant 0 : index
    %c0_18 = arith.constant 0 : index
    %c12 = arith.constant 12 : index
    %58 = vector.load %arg4[%c0_17, %c0_18, %c12] : memref<1x288x16xf32, #tpu.memory_space<vmem>>, vector<1x288x4xf32>
    %59 = vector.shape_cast %58 : vector<1x288x4xf32> to vector<288x4xf32>
    %60 = vector.shape_cast %57 : vector<288x4xf32> to vector<1x288x4xf32>
    tpu.vector_store %arg4[%c0_17, %c0_18, %c12], %60 {strides = array<i32>} : memref<1x288x16xf32, #tpu.memory_space<vmem>>, vector<1x288x4xf32>,
    return
  }
  func.func @transform_0(%arg0: i32) -> (i32, i32, i32) {
    %c0_i32 = arith.constant 0 : i32
    %c0_i32_0 = arith.constant 0 : i32
    %c0_i32_1 = arith.constant 0 : i32
    return %arg0, %c0_i32, %c0_i32_0 : i32, i32, i32
  }
  func.func @transform_1(%arg0: i32) -> (i32, i32) {
    %c0_i32 = arith.constant 0 : i32
    %c0_i32_0 = arith.constant 0 : i32
    %c0_i32_1 = arith.constant 0 : i32
    return %c0_i32, %c0_i32_0 : i32, i32
  }
  func.func @transform_2(%arg0: i32) -> (i32, i32) {
    %c0_i32 = arith.constant 0 : i32
    %c0_i32_0 = arith.constant 0 : i32
    %c0_i32_1 = arith.constant 0 : i32
    return %c0_i32, %c0_i32_0 : i32, i32
  }
  func.func @transform_3(%arg0: i32) -> (i32, i32, i32) {
    %c0_i32 = arith.constant 0 : i32
    %c0_i32_0 = arith.constant 0 : i32
    %c0_i32_1 = arith.constant 0 : i32
    return %arg0, %c0_i32, %c0_i32_0 : i32, i32, i32
  }
}

</mosaic_0001>

<llo_original>
// kernel: tpu_custom_call.1
$region0: #{tpu_custom_call.1}
  #allocation0 [shape = 'u32[]', space=smem, size = 0x4, offset = 0x4, fixed_abs, tag = 'smem constant byte address 0x4 - core index']
  #allocation1 [shape = 'u32[144,128]{1,0:T(1,128)}', space=vmem, size = 0x12000, scoped, tag = 'internal scratch']
  %s0 = inlined_call_operand.vmem [shape: f32[2,342,4], index: 0, kind: input, shape index: {}]
  %s1 = inlined_call_operand.vmem [shape: f32[4,64], index: 1, kind: input, shape index: {}]
  %s2 = inlined_call_operand.vmem [shape: f32[1,4], index: 2, kind: input, shape index: {}]
  %s3 = inlined_call_operand.vmem [shape: f32[2,288,16], index: 3, kind: output, shape index: {}]
  %s4 = sld [smem:[#allocation0]]
  $region45: #{tpu_custom_call.1} parent=0
    _
  %s6 = ssub.s32 1, %s4
  %s7 = scalar_select 0, %s6, %s4
  loop: start=0, step=1, limit=4
  $region2: #{tpu_custom_call.1} parent=0 // loop_pre_header
    _
  $region3: #{tpu_custom_call.1} parent=0 // loop_header
    %s9 = sphi 0, %s13
    %p10 = scmp.ge.s32.totalorder %s9, 4
    %s19 = sphi 0, %s21
    %s22 = sphi 0, %s19
    %s23 = sphi 0, %s22
    %s39 = sphi 0, %s23
    %s43 = sphi 0, %s43
    %s45 = sphi 0, %s43
    %s46 = sphi 0, %s45
    %s60 = sphi 0, %s46
    %s64 = sphi 0, %s64
    %s66 = sphi 0, %s64
    %s67 = sphi 0, %s66
    %s81 = sphi 0, %s67
    %s87 = sphi 0, %s89
    %s90 = sphi 0, %s87
    %s91 = sphi 0, %s90
    %s107 = sphi 0, %s91
  $region4: #{tpu_custom_call.1} parent=0 // loop_header_branch
    %12 = sbr.rel (%p10) target = $region8
  $region5: #{tpu_custom_call.1} parent=0 // loop_body
    %s14 = ssub.s32 %s9, 1
    %s15 = ssub.s32 %s9, 2
    %s16 = sadd.s32 %s9, 1
    %s17 = ssub.s32 %s9, %s16
    %p18 = scmp.eq.s32.totalorder %s17, 0
    %s20 = sadd.s32 %s19, 1
    %s21 = scalar_select %p18, %s19, %s20
    %p24 = pneg %p18
    %p25 = scmp.eq.s32.totalorder %s9, 1
    %p26 = por %p24, %p25
    %p27 = scmp.ne.s32.totalorder %s19, %s22
    %p28 = scmp.eq.s32.totalorder %s9, 0
    %p29 = por %p27, %p28
    %p30 = scmp.ne.s32.totalorder %s19, %s22
    %p31 = scmp.eq.s32.totalorder %s14, 1
    %p32 = por %p30, %p31
    %p33 = scmp.ne.s32.totalorder %s22, %s23
    %p34 = scmp.eq.s32.totalorder %s14, 0
    %p35 = por %p33, %p34
    %p36 = scmp.ne.s32.totalorder %s22, %s23
    %p37 = scmp.eq.s32.totalorder %s15, 1
    %p38 = por %p36, %p37
    %p40 = scmp.ne.s32.totalorder %s23, %s39
    %p41 = scmp.eq.s32.totalorder %s15, 0
    %p42 = por %p40, %p41
    %s44 = sadd.s32 %s43, 1
    %p47 = scmp.eq.s32.totalorder %s9, 1
    %p48 = scmp.ne.s32.totalorder %s43, %s45
    %p49 = scmp.eq.s32.totalorder %s9, 0
    %p50 = por %p48, %p49
    %p51 = scmp.ne.s32.totalorder %s43, %s45
    %p52 = scmp.eq.s32.totalorder %s14, 1
    %p53 = por %p51, %p52
    %p54 = scmp.ne.s32.totalorder %s45, %s46
    %p55 = scmp.eq.s32.totalorder %s14, 0
    %p56 = por %p54, %p55
    %p57 = scmp.ne.s32.totalorder %s45, %s46
    %p58 = scmp.eq.s32.totalorder %s15, 1
    %p59 = por %p57, %p58
    %p61 = scmp.ne.s32.totalorder %s46, %s60
    %p62 = scmp.eq.s32.totalorder %s15, 0
    %p63 = por %p61, %p62
    %s65 = sadd.s32 %s64, 1
    %p68 = scmp.eq.s32.totalorder %s9, 1
    %p69 = scmp.ne.s32.totalorder %s64, %s66
    %p70 = scmp.eq.s32.totalorder %s9, 0
    %p71 = por %p69, %p70
    %p72 = scmp.ne.s32.totalorder %s64, %s66
    %p73 = scmp.eq.s32.totalorder %s14, 1
    %p74 = por %p72, %p73
    %p75 = scmp.ne.s32.totalorder %s66, %s67
    %p76 = scmp.eq.s32.totalorder %s14, 0
    %p77 = por %p75, %p76
    %p78 = scmp.ne.s32.totalorder %s66, %s67
    %p79 = scmp.eq.s32.totalorder %s15, 1
    %p80 = por %p78, %p79
    %p82 = scmp.ne.s32.totalorder %s67, %s81
    %p83 = scmp.eq.s32.totalorder %s15, 0
    %p84 = por %p82, %p83
    %s85 = ssub.s32 %s9, %s16
    %p86 = scmp.eq.s32.totalorder %s85, 0
    %s88 = sadd.s32 %s87, 1
    %s89 = scalar_select %p86, %s87, %s88
    %p92 = pneg %p86
    %p93 = scmp.eq.s32.totalorder %s9, 1
    %p94 = por %p92, %p93
    %p95 = scmp.ne.s32.totalorder %s87, %s90
    %p96 = scmp.eq.s32.totalorder %s9, 0
    %p97 = por %p95, %p96
    %p98 = scmp.ne.s32.totalorder %s87, %s90
    %p99 = scmp.eq.s32.totalorder %s14, 1
    %p100 = por %p98, %p99
    %p101 = scmp.ne.s32.totalorder %s90, %s91
    %p102 = scmp.eq.s32.totalorder %s14, 0
    %p103 = por %p101, %p102
    %p104 = scmp.ne.s32.totalorder %s90, %s91
    %p105 = scmp.eq.s32.totalorder %s15, 1
    %p106 = por %p104, %p105
    %p108 = scmp.ne.s32.totalorder %s91, %s107
    %p109 = scmp.eq.s32.totalorder %s15, 0
    %p110 = por %p108, %p109
    %p111 = scmp.le.s32.totalorder 1, %s9
    %p112 = scmp.lt.s32.totalorder %s9, 3
    %p113 = pnand %p111, %p112
    %p114 = pneg %p113
    // Predicated region
    $region9: #{tpu_custom_call.1} parent=5 // pred_check
      _
    $region10: #{tpu_custom_call.1} parent=5 // pred_check_branch
      %116 = sbr.rel (%p113) target = $region12
    $region11: #{tpu_custom_call.1} parent=5 // pred_region
      %s117 = ssub.s32 %s9, 1
      // Predicated region
      $region13: #{tpu_custom_call.1} parent=11 // pred_check
        %p118 = pneg %p56
      $region14: #{tpu_custom_call.1} parent=11 // pred_check_branch
        %120 = sbr.rel (%p118) target = $region16
      $region15: #{tpu_custom_call.1} parent=11 // pred_region
        _
      $region16: #{tpu_custom_call.1} parent=11 // pred_fallthru
        _
      // Predicated region
      $region17: #{tpu_custom_call.1} parent=11 // pred_check
        %p121 = pneg %p77
      $region18: #{tpu_custom_call.1} parent=11 // pred_check_branch
        %123 = sbr.rel (%p121) target = $region20
      $region19: #{tpu_custom_call.1} parent=11 // pred_region
        _
      $region20: #{tpu_custom_call.1} parent=11 // pred_fallthru
        _
    $region12: #{tpu_custom_call.1} parent=5 // pred_fallthru
      _
    %p124 = scmp.lt.s32.totalorder %s9, 2
    // Predicated region
    $region21: #{tpu_custom_call.1} parent=5 // pred_check
      %p125 = pneg %p124
    $region22: #{tpu_custom_call.1} parent=5 // pred_check_branch
      %127 = sbr.rel (%p125) target = $region24
    $region23: #{tpu_custom_call.1} parent=5 // pred_region
      // Predicated region
      $region25: #{tpu_custom_call.1} parent=23 // pred_check
        %p128 = pneg %p29
      $region26: #{tpu_custom_call.1} parent=23 // pred_check_branch
        %130 = sbr.rel (%p128) target = $region28
      $region27: #{tpu_custom_call.1} parent=23 // pred_region
        %p131 = scmp.lt.s32.totalorder %s9, 1
        %s132 = scalar_select %p131, %s9, 1
        %s133 = smul.addr %s132, 43
        %s134 = smul.addr %s133, 8
        %s135 = scalar_lea.vmem %s0, %s134
      $region28: #{tpu_custom_call.1} parent=23 // pred_fallthru
        _
    $region24: #{tpu_custom_call.1} parent=5 // pred_fallthru
      _
    %p136 = scmp.le.s32.totalorder 1, %s9
    %p137 = scmp.lt.s32.totalorder %s9, 3
    %p138 = pnand %p136, %p137
    %p139 = pneg %p138
    // Predicated region
    $region29: #{tpu_custom_call.1} parent=5 // pred_check
      _
    $region30: #{tpu_custom_call.1} parent=5 // pred_check_branch
      %141 = sbr.rel (%p138) target = $region32
    $region31: #{tpu_custom_call.1} parent=5 // pred_region
      %s142 = ssub.s32 %s9, 1
      %p143 = scmp.lt.s32.totalorder %s14, 1
      %s144 = scalar_select %p143, %s14, 1
      %s145 = smul.addr %s144, 43
      %s146 = smul.addr %s145, 8
      %s147 = scalar_lea.vmem %s0, %s146
      %p148 = pneg %p35
      %p149 = pneg %p32
      %p150 = pneg %p56
      %p151 = pneg %p53
      %p152 = pneg %p77
      %p153 = pneg %p74
      %p154 = pneg %p103
      %p155 = pneg %p100
      %p156 = scmp.lt.s32.totalorder %s14, 1
      %s157 = scalar_select %p156, %s14, 1
      %s158 = smul.addr %s157, 36
      %s159 = smul.addr %s158, 8
      %s160 = scalar_lea.vmem %s3, %s159
      %p161 = scmp.lt.s32.totalorder %s14, 1
      %s162 = scalar_select %p161, %s14, 1
      %s163 = smul.addr %s162, 43
      %s164 = smul.addr %s163, 8
      %s165 = scalar_lea.vmem %s0, %s164
      %p166 = scmp.lt.s32.totalorder %s14, 1
      %s167 = scalar_select %p166, %s14, 1
      %s168 = smul.addr %s167, 36
      %s169 = smul.addr %s168, 8
      %s170 = scalar_lea.vmem %s3, %s169
      %v171 = vld [vmem:[%s165] sm:$0xff]
      %v172 = vld [vmem:[%s165 + $0x8] sm:$0xff]
      %v173 = vld [vmem:[%s165 + $0x10] sm:$0xff]
      %v174 = vld [vmem:[%s165 + $0x18] sm:$0xff]
      %v175 = vld [vmem:[%s165 + $0x20] sm:$0xff]
      %v176 = vld [vmem:[%s165 + $0x28] sm:$0xff]
      %v177 = vld [vmem:[%s165 + $0x30] sm:$0xff]
      %v178 = vld [vmem:[%s165 + $0x38] sm:$0xff]
      %v179 = vld [vmem:[%s165 + $0x40] sm:$0xff]
      %v180 = vld [vmem:[%s165 + $0x48] sm:$0xff]
      %v181 = vld [vmem:[%s165 + $0x50] sm:$0xff]
      %v182 = vld [vmem:[%s165 + $0x58] sm:$0xff]
      %v183 = vld [vmem:[%s165 + $0x60] sm:$0xff]
      %v184 = vld [vmem:[%s165 + $0x68] sm:$0xff]
      %v185 = vld [vmem:[%s165 + $0x70] sm:$0xff]
      %v186 = vld [vmem:[%s165 + $0x78] sm:$0xff]
      %v187 = vld [vmem:[%s165 + $0x80] sm:$0xff]
      %v188 = vld [vmem:[%s165 + $0x88] sm:$0xff]
      %v189 = vld [vmem:[%s165 + $0x90] sm:$0xff]
      %v190 = vld [vmem:[%s165 + $0x98] sm:$0xff]
      %v191 = vld [vmem:[%s165 + $0xa0] sm:$0xff]
      %v192 = vld [vmem:[%s165 + $0xa8] sm:$0xff]
      %v193 = vld [vmem:[%s165 + $0xb0] sm:$0xff]
      %v194 = vld [vmem:[%s165 + $0xb8] sm:$0xff]
      %v195 = vld [vmem:[%s165 + $0xc0] sm:$0xff]
      %v196 = vld [vmem:[%s165 + $0xc8] sm:$0xff]
      %v197 = vld [vmem:[%s165 + $0xd0] sm:$0xff]
      %v198 = vld [vmem:[%s165 + $0xd8] sm:$0xff]
      %v199 = vld [vmem:[%s165 + $0xe0] sm:$0xff]
      %v200 = vld [vmem:[%s165 + $0xe8] sm:$0xff]
      %v201 = vld [vmem:[%s165 + $0xf0] sm:$0xff]
      %v202 = vld [vmem:[%s165 + $0xf8] sm:$0xff]
      %v203 = vld [vmem:[%s165 + $0x100] sm:$0xff]
      %v204 = vld [vmem:[%s165 + $0x108] sm:$0xff]
      %v205 = vld [vmem:[%s165 + $0x110] sm:$0xff]
      %v206 = vld [vmem:[%s165 + $0x118] sm:$0xff]
      %v207 = vld [vmem:[%s165 + $0x120] sm:$0xff]
      %v208 = vld [vmem:[%s165 + $0x128] sm:$0xff]
      %v209 = vld [vmem:[%s165 + $0x130] sm:$0xff]
      %v210 = vld [vmem:[%s165 + $0x138] sm:$0xff]
      %v211 = vld [vmem:[%s165 + $0x140] sm:$0xff]
      %v212 = vld [vmem:[%s165 + $0x148] sm:$0xff]
      %v213 = vld [vmem:[%s165 + $0x150] sm:$0x3f]
      %v214 = vld [vmem:[%s1] sm:$0xf]
      %vm215 = vcmask 31744
      %v217 = vsel %vm215, %v171, 0
      %v220 = vsel %vm215, %v172, 0
      %v223 = vsel %vm215, %v173, 0
      %v226 = vsel %vm215, %v174, 0
      %v229 = vsel %vm215, %v175, 0
      %v232 = vsel %vm215, %v176, 0
      %v235 = vsel %vm215, %v177, 0
      %v238 = vsel %vm215, %v178, 0
      %v241 = vsel %vm215, %v179, 0
      %v244 = vsel %vm215, %v180, 0
      %v247 = vsel %vm215, %v181, 0
      %v250 = vsel %vm215, %v182, 0
      %v253 = vsel %vm215, %v183, 0
      %v256 = vsel %vm215, %v184, 0
      %v259 = vsel %vm215, %v185, 0
      %v262 = vsel %vm215, %v186, 0
      %v265 = vsel %vm215, %v187, 0
      %v268 = vsel %vm215, %v188, 0
      %v271 = vsel %vm215, %v189, 0
      %v274 = vsel %vm215, %v190, 0
      %v277 = vsel %vm215, %v191, 0
      %v280 = vsel %vm215, %v192, 0
      %v283 = vsel %vm215, %v193, 0
      %v286 = vsel %vm215, %v194, 0
      %v289 = vsel %vm215, %v195, 0
      %v292 = vsel %vm215, %v196, 0
      %v295 = vsel %vm215, %v197, 0
      %v298 = vsel %vm215, %v198, 0
      %v301 = vsel %vm215, %v199, 0
      %v304 = vsel %vm215, %v200, 0
      %v307 = vsel %vm215, %v201, 0
      %v310 = vsel %vm215, %v202, 0
      %v313 = vsel %vm215, %v203, 0
      %v316 = vsel %vm215, %v204, 0
      %v319 = vsel %vm215, %v205, 0
      %v322 = vsel %vm215, %v206, 0
      %v325 = vsel %vm215, %v207, 0
      %v328 = vsel %vm215, %v208, 0
      %v331 = vsel %vm215, %v209, 0
      %v334 = vsel %vm215, %v210, 0
      %v337 = vsel %vm215, %v211, 0
      %v340 = vsel %vm215, %v212, 0
      %v343 = vsel %vm215, %v213, 0
      %vm345 = vcmask 1043456
      %v347 = vsel %vm345, %v214, 0
      %349 = vmatprep.subr.mxu0 0.0
      %350 = vmatpush1.msra.mxu0 %v347
      %351 = vmatprep.subr.mxu0 0.0
      %352 = vmatpush1.msra.mxu0 0.0
      %353 = vmatprep.subr.mxu0 0.0
      %354 = vmatpush1.msra.mxu0 0.0
      %355 = vmatprep.subr.mxu0 0.0
      %356 = vmatpush1.msra.mxu0 0.0
      %357 = vmatprep.subr.mxu0 0.0
      %358 = vmatpush1.msra.mxu0 0.0
      %359 = vmatprep.subr.mxu0 0.0
      %360 = vmatpush1.msra.mxu0 0.0
      %361 = vmatprep.subr.mxu0 0.0
      %362 = vmatpush1.msra.mxu0 0.0
      %363 = vmatprep.subr.mxu0 0.0
      %364 = vmatpush1.msra.mxu0 0.0
      %365 = vmatprep.subr.mxu0 0.0
      %366 = vmatpush1.msra.mxu0 0.0
      %367 = vmatprep.subr.mxu0 0.0
      %368 = vmatpush1.msra.mxu0 0.0
      %369 = vmatprep.subr.mxu0 0.0
      %370 = vmatpush1.msra.mxu0 0.0
      %371 = vmatprep.subr.mxu0 0.0
      %372 = vmatpush1.msra.mxu0 0.0
      %373 = vmatprep.subr.mxu0 0.0
      %374 = vmatpush1.msra.mxu0 0.0
      %375 = vmatprep.subr.mxu0 0.0
      %376 = vmatpush1.msra.mxu0 0.0
      %377 = vmatprep.subr.mxu0 0.0
      %378 = vmatpush1.msra.mxu0 0.0
      %379 = vmatprep.subr.mxu0 0.0
      %380 = vmatpush1.msra.mxu0 0.0
      %381 = vmatprep.subr.mxu0 0.0
      %382 = vmatpush1.msra.mxu0 0.0
      %383 = vmatprep.subr.mxu0 0.0
      %384 = vmatpush1.msra.mxu0 0.0
      %385 = vmatprep.subr.mxu0 0.0
      %386 = vmatpush1.msra.mxu0 0.0
      %387 = vmatprep.subr.mxu0 0.0
      %388 = vmatpush1.msra.mxu0 0.0
      %389 = vmatprep.subr.mxu0 0.0
      %390 = vmatpush1.msra.mxu0 0.0
      %391 = vmatprep.subr.mxu0 0.0
      %392 = vmatpush1.msra.mxu0 0.0
      %393 = vmatprep.subr.mxu0 0.0
      %394 = vmatpush1.msra.mxu0 0.0
      %395 = vmatprep.subr.mxu0 0.0
      %396 = vmatpush1.msra.mxu0 0.0
      %397 = vmatprep.subr.mxu0 0.0
      %398 = vmatpush1.msra.mxu0 0.0
      %399 = vmatprep.subr.mxu0 0.0
      %400 = vmatpush1.msra.mxu0 0.0
      %401 = vmatprep.subr.mxu0 0.0
      %402 = vmatpush1.msra.mxu0 0.0
      %403 = vmatprep.subr.mxu0 0.0
      %404 = vmatpush1.msra.mxu0 0.0
      %405 = vmatprep.subr.mxu0 0.0
      %406 = vmatpush1.msra.mxu0 0.0
      %407 = vmatprep.subr.mxu0 0.0
      %408 = vmatpush1.msra.mxu0 0.0
      %409 = vmatprep.subr.mxu0 0.0
      %410 = vmatpush1.msra.mxu0 0.0
      %411 = vmatprep.subr.mxu0 0.0
      %412 = vmatpush1.msra.mxu0 0.0
      %413 = vmatprep.mubr.f32.mxu0 0.0
      %414 = vmatmul.mubr.f32.gmra.mrb[0].mxu0 %v217
      %v415 = vpop.f32.mrb[0].mxu0
      %v416 = vadd.f32 0.0, %v415
      %v417 = vpop.f32.mrb[0].mxu0
      %418 = vmatprep.mubr.f32.mxu0 0.0
      %419 = vmatmul.mubr.f32.gmra.mrb[0].mxu0 %v220
      %v420 = vpop.f32.mrb[0].mxu0
      %v421 = vadd.f32 0.0, %v420
      %v422 = vpop.f32.mrb[0].mxu0
      %423 = vmatprep.mubr.f32.mxu0 0.0
      %424 = vmatmul.mubr.f32.gmra.mrb[0].mxu0 %v223
      %v425 = vpop.f32.mrb[0].mxu0
      %v426 = vadd.f32 0.0, %v425
      %v427 = vpop.f32.mrb[0].mxu0
      %428 = vmatprep.mubr.f32.mxu0 0.0
      %429 = vmatmul.mubr.f32.gmra.mrb[0].mxu0 %v226
      %v430 = vpop.f32.mrb[0].mxu0
      %v431 = vadd.f32 0.0, %v430
      %v432 = vpop.f32.mrb[0].mxu0
      %433 = vmatprep.mubr.f32.mxu0 0.0
      %434 = vmatmul.mubr.f32.gmra.mrb[0].mxu0 %v229
      %v435 = vpop.f32.mrb[0].mxu0
      %v436 = vadd.f32 0.0, %v435
      %v437 = vpop.f32.mrb[0].mxu0
      %438 = vmatprep.mubr.f32.mxu0 0.0
      %439 = vmatmul.mubr.f32.gmra.mrb[0].mxu0 %v232
      %v440 = vpop.f32.mrb[0].mxu0
      %v441 = vadd.f32 0.0, %v440
      %v442 = vpop.f32.mrb[0].mxu0
      %443 = vmatprep.mubr.f32.mxu0 0.0
      %444 = vmatmul.mubr.f32.gmra.mrb[0].mxu0 %v235
      %v445 = vpop.f32.mrb[0].mxu0
      %v446 = vadd.f32 0.0, %v445
      %v447 = vpop.f32.mrb[0].mxu0
      %448 = vmatprep.mubr.f32.mxu0 0.0
      %449 = vmatmul.mubr.f32.gmra.mrb[0].mxu0 %v238
      %v450 = vpop.f32.mrb[0].mxu0
      %v451 = vadd.f32 0.0, %v450
      %v452 = vpop.f32.mrb[0].mxu0
      %453 = vmatprep.mubr.f32.mxu0 0.0
      %454 = vmatmul.mubr.f32.gmra.mrb[0].mxu0 %v241
      %v455 = vpop.f32.mrb[0].mxu0
      %v456 = vadd.f32 0.0, %v455
      %v457 = vpop.f32.mrb[0].mxu0
      %458 = vmatprep.mubr.f32.mxu0 0.0
      %459 = vmatmul.mubr.f32.gmra.mrb[0].mxu0 %v244
      %v460 = vpop.f32.mrb[0].mxu0
      %v461 = vadd.f32 0.0, %v460
      %v462 = vpop.f32.mrb[0].mxu0
      %463 = vmatprep.mubr.f32.mxu0 0.0
      %464 = vmatmul.mubr.f32.gmra.mrb[0].mxu0 %v247
      %v465 = vpop.f32.mrb[0].mxu0
      %v466 = vadd.f32 0.0, %v465
      %v467 = vpop.f32.mrb[0].mxu0
      %468 = vmatprep.mubr.f32.mxu0 0.0
      %469 = vmatmul.mubr.f32.gmra.mrb[0].mxu0 %v250
      %v470 = vpop.f32.mrb[0].mxu0
      %v471 = vadd.f32 0.0, %v470
      %v472 = vpop.f32.mrb[0].mxu0
      %473 = vmatprep.mubr.f32.mxu0 0.0
      %474 = vmatmul.mubr.f32.gmra.mrb[0].mxu0 %v253
      %v475 = vpop.f32.mrb[0].mxu0
      %v476 = vadd.f32 0.0, %v475
      %v477 = vpop.f32.mrb[0].mxu0
      %478 = vmatprep.mubr.f32.mxu0 0.0
      %479 = vmatmul.mubr.f32.gmra.mrb[0].mxu0 %v256
      %v480 = vpop.f32.mrb[0].mxu0
      %v481 = vadd.f32 0.0, %v480
      %v482 = vpop.f32.mrb[0].mxu0
      %483 = vmatprep.mubr.f32.mxu0 0.0
      %484 = vmatmul.mubr.f32.gmra.mrb[0].mxu0 %v259
      %v485 = vpop.f32.mrb[0].mxu0
      %v486 = vadd.f32 0.0, %v485
      %v487 = vpop.f32.mrb[0].mxu0
      %488 = vmatprep.mubr.f32.mxu0 0.0
      %489 = vmatmul.mubr.f32.gmra.mrb[0].mxu0 %v262
      %v490 = vpop.f32.mrb[0].mxu0
      %v491 = vadd.f32 0.0, %v490
      %v492 = vpop.f32.mrb[0].mxu0
      %493 = vmatprep.mubr.f32.mxu0 0.0
      %494 = vmatmul.mubr.f32.gmra.mrb[0].mxu0 %v265
      %v495 = vpop.f32.mrb[0].mxu0
      %v496 = vadd.f32 0.0, %v495
      %v497 = vpop.f32.mrb[0].mxu0
      %498 = vmatprep.mubr.f32.mxu0 0.0
      %499 = vmatmul.mubr.f32.gmra.mrb[0].mxu0 %v268
      %v500 = vpop.f32.mrb[0].mxu0
      %v501 = vadd.f32 0.0, %v500
      %v502 = vpop.f32.mrb[0].mxu0
      %503 = vmatprep.mubr.f32.mxu0 0.0
      %504 = vmatmul.mubr.f32.gmra.mrb[0].mxu0 %v271
      %v505 = vpop.f32.mrb[0].mxu0
      %v506 = vadd.f32 0.0, %v505
      %v507 = vpop.f32.mrb[0].mxu0
      %508 = vmatprep.mubr.f32.mxu0 0.0
      %509 = vmatmul.mubr.f32.gmra.mrb[0].mxu0 %v274
      %v510 = vpop.f32.mrb[0].mxu0
      %v511 = vadd.f32 0.0, %v510
      %v512 = vpop.f32.mrb[0].mxu0
      %513 = vmatprep.mubr.f32.mxu0 0.0
      %514 = vmatmul.mubr.f32.gmra.mrb[0].mxu0 %v277
      %v515 = vpop.f32.mrb[0].mxu0
      %v516 = vadd.f32 0.0, %v515
      %v517 = vpop.f32.mrb[0].mxu0
      %518 = vmatprep.mubr.f32.mxu0 0.0
      %519 = vmatmul.mubr.f32.gmra.mrb[0].mxu0 %v280
      %v520 = vpop.f32.mrb[0].mxu0
      %v521 = vadd.f32 0.0, %v520
      %v522 = vpop.f32.mrb[0].mxu0
      %523 = vmatprep.mubr.f32.mxu0 0.0
      %524 = vmatmul.mubr.f32.gmra.mrb[0].mxu0 %v283
      %v525 = vpop.f32.mrb[0].mxu0
      %v526 = vadd.f32 0.0, %v525
      %v527 = vpop.f32.mrb[0].mxu0
      %528 = vmatprep.mubr.f32.mxu0 0.0
      %529 = vmatmul.mubr.f32.gmra.mrb[0].mxu0 %v286
      %v530 = vpop.f32.mrb[0].mxu0
      %v531 = vadd.f32 0.0, %v530
      %v532 = vpop.f32.mrb[0].mxu0
      %533 = vmatprep.mubr.f32.mxu0 0.0
      %534 = vmatmul.mubr.f32.gmra.mrb[0].mxu0 %v289
      %v535 = vpop.f32.mrb[0].mxu0
      %v536 = vadd.f32 0.0, %v535
      %v537 = vpop.f32.mrb[0].mxu0
      %538 = vmatprep.mubr.f32.mxu0 0.0
      %539 = vmatmul.mubr.f32.gmra.mrb[0].mxu0 %v292
      %v540 = vpop.f32.mrb[0].mxu0
      %v541 = vadd.f32 0.0, %v540
      %v542 = vpop.f32.mrb[0].mxu0
      %543 = vmatprep.mubr.f32.mxu0 0.0
      %544 = vmatmul.mubr.f32.gmra.mrb[0].mxu0 %v295
      %v545 = vpop.f32.mrb[0].mxu0
      %v546 = vadd.f32 0.0, %v545
      %v547 = vpop.f32.mrb[0].mxu0
      %548 = vmatprep.mubr.f32.mxu0 0.0
      %549 = vmatmul.mubr.f32.gmra.mrb[0].mxu0 %v298
      %v550 = vpop.f32.mrb[0].mxu0
      %v551 = vadd.f32 0.0, %v550
      %v552 = vpop.f32.mrb[0].mxu0
      %553 = vmatprep.mubr.f32.mxu0 0.0
      %554 = vmatmul.mubr.f32.gmra.mrb[0].mxu0 %v301
      %v555 = vpop.f32.mrb[0].mxu0
      %v556 = vadd.f32 0.0, %v555
      %v557 = vpop.f32.mrb[0].mxu0
      %558 = vmatprep.mubr.f32.mxu0 0.0
      %559 = vmatmul.mubr.f32.gmra.mrb[0].mxu0 %v304
      %v560 = vpop.f32.mrb[0].mxu0
      %v561 = vadd.f32 0.0, %v560
      %v562 = vpop.f32.mrb[0].mxu0
      %563 = vmatprep.mubr.f32.mxu0 0.0
      %564 = vmatmul.mubr.f32.gmra.mrb[0].mxu0 %v307
      %v565 = vpop.f32.mrb[0].mxu0
      %v566 = vadd.f32 0.0, %v565
      %v567 = vpop.f32.mrb[0].mxu0
      %568 = vmatprep.mubr.f32.mxu0 0.0
      %569 = vmatmul.mubr.f32.gmra.mrb[0].mxu0 %v310
      %v570 = vpop.f32.mrb[0].mxu0
      %v571 = vadd.f32 0.0, %v570
      %v572 = vpop.f32.mrb[0].mxu0
      %573 = vmatprep.mubr.f32.mxu0 0.0
      %574 = vmatmul.mubr.f32.gmra.mrb[0].mxu0 %v313
      %v575 = vpop.f32.mrb[0].mxu0
      %v576 = vadd.f32 0.0, %v575
      %v577 = vpop.f32.mrb[0].mxu0
      %578 = vmatprep.mubr.f32.mxu0 0.0
      %579 = vmatmul.mubr.f32.gmra.mrb[0].mxu0 %v316
      %v580 = vpop.f32.mrb[0].mxu0
      %v581 = vadd.f32 0.0, %v580
      %v582 = vpop.f32.mrb[0].mxu0
      %583 = vmatprep.mubr.f32.mxu0 0.0
      %584 = vmatmul.mubr.f32.gmra.mrb[0].mxu0 %v319
      %v585 = vpop.f32.mrb[0].mxu0
      %v586 = vadd.f32 0.0, %v585
      %v587 = vpop.f32.mrb[0].mxu0
      %588 = vmatprep.mubr.f32.mxu0 0.0
      %589 = vmatmul.mubr.f32.gmra.mrb[0].mxu0 %v322
      %v590 = vpop.f32.mrb[0].mxu0
      %v591 = vadd.f32 0.0, %v590
      %v592 = vpop.f32.mrb[0].mxu0
      %593 = vmatprep.mubr.f32.mxu0 0.0
      %594 = vmatmul.mubr.f32.gmra.mrb[0].mxu0 %v325
      %v595 = vpop.f32.mrb[0].mxu0
      %v596 = vadd.f32 0.0, %v595
      %v597 = vpop.f32.mrb[0].mxu0
      %598 = vmatprep.mubr.f32.mxu0 0.0
      %599 = vmatmul.mubr.f32.gmra.mrb[0].mxu0 %v328
      %v600 = vpop.f32.mrb[0].mxu0
      %v601 = vadd.f32 0.0, %v600
      %v602 = vpop.f32.mrb[0].mxu0
      %603 = vmatprep.mubr.f32.mxu0 0.0
      %604 = vmatmul.mubr.f32.gmra.mrb[0].mxu0 %v331
      %v605 = vpop.f32.mrb[0].mxu0
      %v606 = vadd.f32 0.0, %v605
      %v607 = vpop.f32.mrb[0].mxu0
      %608 = vmatprep.mubr.f32.mxu0 0.0
      %609 = vmatmul.mubr.f32.gmra.mrb[0].mxu0 %v334
      %v610 = vpop.f32.mrb[0].mxu0
      %v611 = vadd.f32 0.0, %v610
      %v612 = vpop.f32.mrb[0].mxu0
      %613 = vmatprep.mubr.f32.mxu0 0.0
      %614 = vmatmul.mubr.f32.gmra.mrb[0].mxu0 %v337
      %v615 = vpop.f32.mrb[0].mxu0
      %v616 = vadd.f32 0.0, %v615
      %v617 = vpop.f32.mrb[0].mxu0
      %618 = vmatprep.mubr.f32.mxu0 0.0
      %619 = vmatmul.mubr.f32.gmra.mrb[0].mxu0 %v340
      %v620 = vpop.f32.mrb[0].mxu0
      %v621 = vpop.f32.mrb[0].mxu0
      %622 = vmatprep.mubr.f32.mxu0 0.0
      %623 = vmatmul.mubr.f32.gmra.mrb[0].mxu0 %v343
      %v624 = vpop.f32.mrb[0].mxu0
      %v625 = vpop.f32.mrb[0].mxu0
      %626 = vdwg.mxu0
      %v627 = vld [vmem:[%s2] sm:$0x1]
      %vm665 = vcmask 1046528
      %v666 = vrot.slane %v416, 1
      %v667 = vrot.slane %v421, 1
      %v668 = vsel %vm665, %v666, %v667
      %v669 = vrot.slane %v426, 1
      %v670 = vsel %vm665, %v667, %v669
      %v671 = vrot.slane %v431, 1
      %v672 = vsel %vm665, %v669, %v671
      %v673 = vrot.slane %v436, 1
      %v674 = vsel %vm665, %v671, %v673
      %v675 = vrot.slane %v441, 1
      %v676 = vsel %vm665, %v673, %v675
      %v677 = vrot.slane %v446, 1
      %v678 = vsel %vm665, %v675, %v677
      %v679 = vrot.slane %v451, 1
      %v680 = vsel %vm665, %v677, %v679
      %v681 = vrot.slane %v456, 1
      %v682 = vsel %vm665, %v679, %v681
      %v683 = vrot.slane %v461, 1
      %v684 = vsel %vm665, %v681, %v683
      %v685 = vrot.slane %v466, 1
      %v686 = vsel %vm665, %v683, %v685
      %v687 = vrot.slane %v471, 1
      %v688 = vsel %vm665, %v685, %v687
      %v689 = vrot.slane %v476, 1
      %v690 = vsel %vm665, %v687, %v689
      %v691 = vrot.slane %v481, 1
      %v692 = vsel %vm665, %v689, %v691
      %v693 = vrot.slane %v486, 1
      %v694 = vsel %vm665, %v691, %v693
      %v695 = vrot.slane %v491, 1
      %v696 = vsel %vm665, %v693, %v695
      %v697 = vrot.slane %v496, 1
      %v698 = vsel %vm665, %v695, %v697
      %v699 = vrot.slane %v501, 1
      %v700 = vsel %vm665, %v697, %v699
      %v701 = vrot.slane %v506, 1
      %v702 = vsel %vm665, %v699, %v701
      %v703 = vrot.slane %v511, 1
      %v704 = vsel %vm665, %v701, %v703
      %v705 = vrot.slane %v516, 1
      %v706 = vsel %vm665, %v703, %v705
      %v707 = vrot.slane %v521, 1
      %v708 = vsel %vm665, %v705, %v707
      %v709 = vrot.slane %v526, 1
      %v710 = vsel %vm665, %v707, %v709
      %v711 = vrot.slane %v531, 1
      %v712 = vsel %vm665, %v709, %v711
      %v713 = vrot.slane %v536, 1
      %v714 = vsel %vm665, %v711, %v713
      %v715 = vrot.slane %v541, 1
      %v716 = vsel %vm665, %v713, %v715
      %v717 = vrot.slane %v546, 1
      %v718 = vsel %vm665, %v715, %v717
      %v719 = vrot.slane %v551, 1
      %v720 = vsel %vm665, %v717, %v719
      %v721 = vrot.slane %v556, 1
      %v722 = vsel %vm665, %v719, %v721
      %v723 = vrot.slane %v561, 1
      %v724 = vsel %vm665, %v721, %v723
      %v725 = vrot.slane %v566, 1
      %v726 = vsel %vm665, %v723, %v725
      %v727 = vrot.slane %v571, 1
      %v728 = vsel %vm665, %v725, %v727
      %v729 = vrot.slane %v576, 1
      %v730 = vsel %vm665, %v727, %v729
      %v731 = vrot.slane %v581, 1
      %v732 = vsel %vm665, %v729, %v731
      %v733 = vrot.slane %v586, 1
      %v734 = vsel %vm665, %v731, %v733
      %v735 = vrot.slane %v591, 1
      %v736 = vsel %vm665, %v733, %v735
      %v737 = vrot.slane %v596, 1
      %v738 = vsel %vm665, %v735, %v737
      %739 = vrot.lane.b32.xlu0 %v668, 8
      %v740 = vpop.permute.xlu0 %739
      %741 = vrot.lane.b32.xlu0 %v670, 8
      %v742 = vpop.permute.xlu0 %741
      %743 = vrot.lane.b32.xlu0 %v672, 8
      %v744 = vpop.permute.xlu0 %743
      %745 = vrot.lane.b32.xlu0 %v674, 8
      %v746 = vpop.permute.xlu0 %745
      %747 = vrot.lane.b32.xlu0 %v676, 8
      %v748 = vpop.permute.xlu0 %747
      %749 = vrot.lane.b32.xlu0 %v678, 8
      %v750 = vpop.permute.xlu0 %749
      %751 = vrot.lane.b32.xlu0 %v680, 8
      %v752 = vpop.permute.xlu0 %751
      %753 = vrot.lane.b32.xlu0 %v682, 8
      %v754 = vpop.permute.xlu0 %753
      %755 = vrot.lane.b32.xlu0 %v684, 8
      %v756 = vpop.permute.xlu0 %755
      %757 = vrot.lane.b32.xlu0 %v686, 8
      %v758 = vpop.permute.xlu0 %757
      %759 = vrot.lane.b32.xlu0 %v688, 8
      %v760 = vpop.permute.xlu0 %759
      %761 = vrot.lane.b32.xlu0 %v690, 8
      %v762 = vpop.permute.xlu0 %761
      %763 = vrot.lane.b32.xlu0 %v692, 8
      %v764 = vpop.permute.xlu0 %763
      %765 = vrot.lane.b32.xlu0 %v694, 8
      %v766 = vpop.permute.xlu0 %765
      %767 = vrot.lane.b32.xlu0 %v696, 8
      %v768 = vpop.permute.xlu0 %767
      %769 = vrot.lane.b32.xlu0 %v698, 8
      %v770 = vpop.permute.xlu0 %769
      %771 = vrot.lane.b32.xlu0 %v700, 8
      %v772 = vpop.permute.xlu0 %771
      %773 = vrot.lane.b32.xlu0 %v702, 8
      %v774 = vpop.permute.xlu0 %773
      %775 = vrot.lane.b32.xlu0 %v704, 8
      %v776 = vpop.permute.xlu0 %775
      %777 = vrot.lane.b32.xlu0 %v706, 8
      %v778 = vpop.permute.xlu0 %777
      %779 = vrot.lane.b32.xlu0 %v708, 8
      %v780 = vpop.permute.xlu0 %779
      %781 = vrot.lane.b32.xlu0 %v710, 8
      %v782 = vpop.permute.xlu0 %781
      %783 = vrot.lane.b32.xlu0 %v712, 8
      %v784 = vpop.permute.xlu0 %783
      %785 = vrot.lane.b32.xlu0 %v714, 8
      %v786 = vpop.permute.xlu0 %785
      %787 = vrot.lane.b32.xlu0 %v716, 8
      %v788 = vpop.permute.xlu0 %787
      %789 = vrot.lane.b32.xlu0 %v718, 8
      %v790 = vpop.permute.xlu0 %789
      %791 = vrot.lane.b32.xlu0 %v720, 8
      %v792 = vpop.permute.xlu0 %791
      %793 = vrot.lane.b32.xlu0 %v722, 8
      %v794 = vpop.permute.xlu0 %793
      %795 = vrot.lane.b32.xlu0 %v724, 8
      %v796 = vpop.permute.xlu0 %795
      %797 = vrot.lane.b32.xlu0 %v726, 8
      %v798 = vpop.permute.xlu0 %797
      %799 = vrot.lane.b32.xlu0 %v728, 8
      %v800 = vpop.permute.xlu0 %799
      %801 = vrot.lane.b32.xlu0 %v730, 8
      %v802 = vpop.permute.xlu0 %801
      %803 = vrot.lane.b32.xlu0 %v732, 8
      %v804 = vpop.permute.xlu0 %803
      %805 = vrot.lane.b32.xlu0 %v734, 8
      %v806 = vpop.permute.xlu0 %805
      %807 = vrot.lane.b32.xlu0 %v736, 8
      %v808 = vpop.permute.xlu0 %807
      %809 = vrot.lane.b32.xlu0 %v738, 8
      %v810 = vpop.permute.xlu0 %809
      %v847 = vadd.f32 %v416, %v740
      %v848 = vadd.f32 %v421, %v742
      %v849 = vadd.f32 %v426, %v744
      %v850 = vadd.f32 %v431, %v746
      %v851 = vadd.f32 %v436, %v748
      %v852 = vadd.f32 %v441, %v750
      %v853 = vadd.f32 %v446, %v752
      %v854 = vadd.f32 %v451, %v754
      %v855 = vadd.f32 %v456, %v756
      %v856 = vadd.f32 %v461, %v758
      %v857 = vadd.f32 %v466, %v760
      %v858 = vadd.f32 %v471, %v762
      %v859 = vadd.f32 %v476, %v764
      %v860 = vadd.f32 %v481, %v766
      %v861 = vadd.f32 %v486, %v768
      %v862 = vadd.f32 %v491, %v770
      %v863 = vadd.f32 %v496, %v772
      %v864 = vadd.f32 %v501, %v774
      %v865 = vadd.f32 %v506, %v776
      %v866 = vadd.f32 %v511, %v778
      %v867 = vadd.f32 %v516, %v780
      %v868 = vadd.f32 %v521, %v782
      %v869 = vadd.f32 %v526, %v784
      %v870 = vadd.f32 %v531, %v786
      %v871 = vadd.f32 %v536, %v788
      %v872 = vadd.f32 %v541, %v790
      %v873 = vadd.f32 %v546, %v792
      %v874 = vadd.f32 %v551, %v794
      %v875 = vadd.f32 %v556, %v796
      %v876 = vadd.f32 %v561, %v798
      %v877 = vadd.f32 %v566, %v800
      %v878 = vadd.f32 %v571, %v802
      %v879 = vadd.f32 %v576, %v804
      %v880 = vadd.f32 %v581, %v806
      %v881 = vadd.f32 %v586, %v808
      %v882 = vadd.f32 %v591, %v810
      %vm885 = vcmask 1045504
      %v886 = vrot.slane %v426, 2
      %v887 = vrot.slane %v431, 2
      %v888 = vsel %vm885, %v886, %v887
      %v889 = vrot.slane %v436, 2
      %v890 = vsel %vm885, %v887, %v889
      %v891 = vrot.slane %v441, 2
      %v892 = vsel %vm885, %v889, %v891
      %v893 = vrot.slane %v446, 2
      %v894 = vsel %vm885, %v891, %v893
      %v895 = vrot.slane %v451, 2
      %v896 = vsel %vm885, %v893, %v895
      %v897 = vrot.slane %v456, 2
      %v898 = vsel %vm885, %v895, %v897
      %v899 = vrot.slane %v461, 2
      %v900 = vsel %vm885, %v897, %v899
      %v901 = vrot.slane %v466, 2
      %v902 = vsel %vm885, %v899, %v901
      %v903 = vrot.slane %v471, 2
      %v904 = vsel %vm885, %v901, %v903
      %v905 = vrot.slane %v476, 2
      %v906 = vsel %vm885, %v903, %v905
      %v907 = vrot.slane %v481, 2
      %v908 = vsel %vm885, %v905, %v907
      %v909 = vrot.slane %v486, 2
      %v910 = vsel %vm885, %v907, %v909
      %v911 = vrot.slane %v491, 2
      %v912 = vsel %vm885, %v909, %v911
      %v913 = vrot.slane %v496, 2
      %v914 = vsel %vm885, %v911, %v913
      %v915 = vrot.slane %v501, 2
      %v916 = vsel %vm885, %v913, %v915
      %v917 = vrot.slane %v506, 2
      %v918 = vsel %vm885, %v915, %v917
      %v919 = vrot.slane %v511, 2
      %v920 = vsel %vm885, %v917, %v919
      %v921 = vrot.slane %v516, 2
      %v922 = vsel %vm885, %v919, %v921
      %v923 = vrot.slane %v521, 2
      %v924 = vsel %vm885, %v921, %v923
      %v925 = vrot.slane %v526, 2
      %v926 = vsel %vm885, %v923, %v925
      %v927 = vrot.slane %v531, 2
      %v928 = vsel %vm885, %v925, %v927
      %v929 = vrot.slane %v536, 2
      %v930 = vsel %vm885, %v927, %v929
      %v931 = vrot.slane %v541, 2
      %v932 = vsel %vm885, %v929, %v931
      %v933 = vrot.slane %v546, 2
      %v934 = vsel %vm885, %v931, %v933
      %v935 = vrot.slane %v551, 2
      %v936 = vsel %vm885, %v933, %v935
      %v937 = vrot.slane %v556, 2
      %v938 = vsel %vm885, %v935, %v937
      %v939 = vrot.slane %v561, 2
      %v940 = vsel %vm885, %v937, %v939
      %v941 = vrot.slane %v566, 2
      %v942 = vsel %vm885, %v939, %v941
      %v943 = vrot.slane %v571, 2
      %v944 = vsel %vm885, %v941, %v943
      %v945 = vrot.slane %v576, 2
      %v946 = vsel %vm885, %v943, %v945
      %v947 = vrot.slane %v581, 2
      %v948 = vsel %vm885, %v945, %v947
      %v949 = vrot.slane %v586, 2
      %v950 = vsel %vm885, %v947, %v949
      %v951 = vrot.slane %v591, 2
      %v952 = vsel %vm885, %v949, %v951
      %v953 = vrot.slane %v596, 2
      %v954 = vsel %vm885, %v951, %v953
      %v955 = vrot.slane %v601, 2
      %v956 = vsel %vm885, %v953, %v955
      %v957 = vrot.slane %v606, 2
      %v958 = vsel %vm885, %v955, %v957
      %959 = vrot.lane.b32.xlu0 %v888, 32
      %v960 = vpop.permute.xlu0 %959
      %961 = vrot.lane.b32.xlu0 %v890, 32
      %v962 = vpop.permute.xlu0 %961
      %963 = vrot.lane.b32.xlu0 %v892, 32
      %v964 = vpop.permute.xlu0 %963
      %965 = vrot.lane.b32.xlu0 %v894, 32
      %v966 = vpop.permute.xlu0 %965
      %967 = vrot.lane.b32.xlu0 %v896, 32
      %v968 = vpop.permute.xlu0 %967
      %969 = vrot.lane.b32.xlu0 %v898, 32
      %v970 = vpop.permute.xlu0 %969
      %971 = vrot.lane.b32.xlu0 %v900, 32
      %v972 = vpop.permute.xlu0 %971
      %973 = vrot.lane.b32.xlu0 %v902, 32
      %v974 = vpop.permute.xlu0 %973
      %975 = vrot.lane.b32.xlu0 %v904, 32
      %v976 = vpop.permute.xlu0 %975
      %977 = vrot.lane.b32.xlu0 %v906, 32
      %v978 = vpop.permute.xlu0 %977
      %979 = vrot.lane.b32.xlu0 %v908, 32
      %v980 = vpop.permute.xlu0 %979
      %981 = vrot.lane.b32.xlu0 %v910, 32
      %v982 = vpop.permute.xlu0 %981
      %983 = vrot.lane.b32.xlu0 %v912, 32
      %v984 = vpop.permute.xlu0 %983
      %985 = vrot.lane.b32.xlu0 %v914, 32
      %v986 = vpop.permute.xlu0 %985
      %987 = vrot.lane.b32.xlu0 %v916, 32
      %v988 = vpop.permute.xlu0 %987
      %989 = vrot.lane.b32.xlu0 %v918, 32
      %v990 = vpop.permute.xlu0 %989
      %991 = vrot.lane.b32.xlu0 %v920, 32
      %v992 = vpop.permute.xlu0 %991
      %993 = vrot.lane.b32.xlu0 %v922, 32
      %v994 = vpop.permute.xlu0 %993
      %995 = vrot.lane.b32.xlu0 %v924, 32
      %v996 = vpop.permute.xlu0 %995
      %997 = vrot.lane.b32.xlu0 %v926, 32
      %v998 = vpop.permute.xlu0 %997
      %999 = vrot.lane.b32.xlu0 %v928, 32
      %v1000 = vpop.permute.xlu0 %999
      %1001 = vrot.lane.b32.xlu0 %v930, 32
      %v1002 = vpop.permute.xlu0 %1001
      %1003 = vrot.lane.b32.xlu0 %v932, 32
      %v1004 = vpop.permute.xlu0 %1003
      %1005 = vrot.lane.b32.xlu0 %v934, 32
      %v1006 = vpop.permute.xlu0 %1005
      %1007 = vrot.lane.b32.xlu0 %v936, 32
      %v1008 = vpop.permute.xlu0 %1007
      %1009 = vrot.lane.b32.xlu0 %v938, 32
      %v1010 = vpop.permute.xlu0 %1009
      %1011 = vrot.lane.b32.xlu0 %v940, 32
      %v1012 = vpop.permute.xlu0 %1011
      %1013 = vrot.lane.b32.xlu0 %v942, 32
      %v1014 = vpop.permute.xlu0 %1013
      %1015 = vrot.lane.b32.xlu0 %v944, 32
      %v1016 = vpop.permute.xlu0 %1015
      %1017 = vrot.lane.b32.xlu0 %v946, 32
      %v1018 = vpop.permute.xlu0 %1017
      %1019 = vrot.lane.b32.xlu0 %v948, 32
      %v1020 = vpop.permute.xlu0 %1019
      %1021 = vrot.lane.b32.xlu0 %v950, 32
      %v1022 = vpop.permute.xlu0 %1021
      %1023 = vrot.lane.b32.xlu0 %v952, 32
      %v1024 = vpop.permute.xlu0 %1023
      %1025 = vrot.lane.b32.xlu0 %v954, 32
      %v1026 = vpop.permute.xlu0 %1025
      %1027 = vrot.lane.b32.xlu0 %v956, 32
      %v1028 = vpop.permute.xlu0 %1027
      %1029 = vrot.lane.b32.xlu0 %v958, 32
      %v1030 = vpop.permute.xlu0 %1029
      %v1067 = vadd.f32 %v847, %v960
      %v1068 = vadd.f32 %v848, %v962
      %v1069 = vadd.f32 %v849, %v964
      %v1070 = vadd.f32 %v850, %v966
      %v1071 = vadd.f32 %v851, %v968
      %v1072 = vadd.f32 %v852, %v970
      %v1073 = vadd.f32 %v853, %v972
      %v1074 = vadd.f32 %v854, %v974
      %v1075 = vadd.f32 %v855, %v976
      %v1076 = vadd.f32 %v856, %v978
      %v1077 = vadd.f32 %v857, %v980
      %v1078 = vadd.f32 %v858, %v982
      %v1079 = vadd.f32 %v859, %v984
      %v1080 = vadd.f32 %v860, %v986
      %v1081 = vadd.f32 %v861, %v988
      %v1082 = vadd.f32 %v862, %v990
      %v1083 = vadd.f32 %v863, %v992
      %v1084 = vadd.f32 %v864, %v994
      %v1085 = vadd.f32 %v865, %v996
      %v1086 = vadd.f32 %v866, %v998
      %v1087 = vadd.f32 %v867, %v1000
      %v1088 = vadd.f32 %v868, %v1002
      %v1089 = vadd.f32 %v869, %v1004
      %v1090 = vadd.f32 %v870, %v1006
      %v1091 = vadd.f32 %v871, %v1008
      %v1092 = vadd.f32 %v872, %v1010
      %v1093 = vadd.f32 %v873, %v1012
      %v1094 = vadd.f32 %v874, %v1014
      %v1095 = vadd.f32 %v875, %v1016
      %v1096 = vadd.f32 %v876, %v1018
      %v1097 = vadd.f32 %v877, %v1020
      %v1098 = vadd.f32 %v878, %v1022
      %v1099 = vadd.f32 %v879, %v1024
      %v1100 = vadd.f32 %v880, %v1026
      %v1101 = vadd.f32 %v881, %v1028
      %v1102 = vadd.f32 %v882, %v1030
      %vm1103 = vcmask 1044480
      %v1104 = vrot.slane %v426, 3
      %v1105 = vrot.slane %v431, 3
      %v1106 = vsel %vm1103, %v1104, %v1105
      %v1107 = vrot.slane %v436, 3
      %v1108 = vsel %vm1103, %v1105, %v1107
      %v1109 = vrot.slane %v441, 3
      %v1110 = vsel %vm1103, %v1107, %v1109
      %v1111 = vrot.slane %v446, 3
      %v1112 = vsel %vm1103, %v1109, %v1111
      %v1113 = vrot.slane %v451, 3
      %v1114 = vsel %vm1103, %v1111, %v1113
      %v1115 = vrot.slane %v456, 3
      %v1116 = vsel %vm1103, %v1113, %v1115
      %v1117 = vrot.slane %v461, 3
      %v1118 = vsel %vm1103, %v1115, %v1117
      %v1119 = vrot.slane %v466, 3
      %v1120 = vsel %vm1103, %v1117, %v1119
      %v1121 = vrot.slane %v471, 3
      %v1122 = vsel %vm1103, %v1119, %v1121
      %v1123 = vrot.slane %v476, 3
      %v1124 = vsel %vm1103, %v1121, %v1123
      %v1125 = vrot.slane %v481, 3
      %v1126 = vsel %vm1103, %v1123, %v1125
      %v1127 = vrot.slane %v486, 3
      %v1128 = vsel %vm1103, %v1125, %v1127
      %v1129 = vrot.slane %v491, 3
      %v1130 = vsel %vm1103, %v1127, %v1129
      %v1131 = vrot.slane %v496, 3
      %v1132 = vsel %vm1103, %v1129, %v1131
      %v1133 = vrot.slane %v501, 3
      %v1134 = vsel %vm1103, %v1131, %v1133
      %v1135 = vrot.slane %v506, 3
      %v1136 = vsel %vm1103, %v1133, %v1135
      %v1137 = vrot.slane %v511, 3
      %v1138 = vsel %vm1103, %v1135, %v1137
      %v1139 = vrot.slane %v516, 3
      %v1140 = vsel %vm1103, %v1137, %v1139
      %v1141 = vrot.slane %v521, 3
      %v1142 = vsel %vm1103, %v1139, %v1141
      %v1143 = vrot.slane %v526, 3
      %v1144 = vsel %vm1103, %v1141, %v1143
      %v1145 = vrot.slane %v531, 3
      %v1146 = vsel %vm1103, %v1143, %v1145
      %v1147 = vrot.slane %v536, 3
      %v1148 = vsel %vm1103, %v1145, %v1147
      %v1149 = vrot.slane %v541, 3
      %v1150 = vsel %vm1103, %v1147, %v1149
      %v1151 = vrot.slane %v546, 3
      %v1152 = vsel %vm1103, %v1149, %v1151
      %v1153 = vrot.slane %v551, 3
      %v1154 = vsel %vm1103, %v1151, %v1153
      %v1155 = vrot.slane %v556, 3
      %v1156 = vsel %vm1103, %v1153, %v1155
      %v1157 = vrot.slane %v561, 3
      %v1158 = vsel %vm1103, %v1155, %v1157
      %v1159 = vrot.slane %v566, 3
      %v1160 = vsel %vm1103, %v1157, %v1159
      %v1161 = vrot.slane %v571, 3
      %v1162 = vsel %vm1103, %v1159, %v1161
      %v1163 = vrot.slane %v576, 3
      %v1164 = vsel %vm1103, %v1161, %v1163
      %v1165 = vrot.slane %v581, 3
      %v1166 = vsel %vm1103, %v1163, %v1165
      %v1167 = vrot.slane %v586, 3
      %v1168 = vsel %vm1103, %v1165, %v1167
      %v1169 = vrot.slane %v591, 3
      %v1170 = vsel %vm1103, %v1167, %v1169
      %v1171 = vrot.slane %v596, 3
      %v1172 = vsel %vm1103, %v1169, %v1171
      %v1173 = vrot.slane %v601, 3
      %v1174 = vsel %vm1103, %v1171, %v1173
      %v1175 = vrot.slane %v606, 3
      %v1176 = vsel %vm1103, %v1173, %v1175
      %1177 = vrot.lane.b32.xlu0 %v1106, 40
      %v1178 = vpop.permute.xlu0 %1177
      %1179 = vrot.lane.b32.xlu0 %v1108, 40
      %v1180 = vpop.permute.xlu0 %1179
      %1181 = vrot.lane.b32.xlu0 %v1110, 40
      %v1182 = vpop.permute.xlu0 %1181
      %1183 = vrot.lane.b32.xlu0 %v1112, 40
      %v1184 = vpop.permute.xlu0 %1183
      %1185 = vrot.lane.b32.xlu0 %v1114, 40
      %v1186 = vpop.permute.xlu0 %1185
      %1187 = vrot.lane.b32.xlu0 %v1116, 40
      %v1188 = vpop.permute.xlu0 %1187
      %1189 = vrot.lane.b32.xlu0 %v1118, 40
      %v1190 = vpop.permute.xlu0 %1189
      %1191 = vrot.lane.b32.xlu0 %v1120, 40
      %v1192 = vpop.permute.xlu0 %1191
      %1193 = vrot.lane.b32.xlu0 %v1122, 40
      %v1194 = vpop.permute.xlu0 %1193
      %1195 = vrot.lane.b32.xlu0 %v1124, 40
      %v1196 = vpop.permute.xlu0 %1195
      %1197 = vrot.lane.b32.xlu0 %v1126, 40
      %v1198 = vpop.permute.xlu0 %1197
      %1199 = vrot.lane.b32.xlu0 %v1128, 40
      %v1200 = vpop.permute.xlu0 %1199
      %1201 = vrot.lane.b32.xlu0 %v1130, 40
      %v1202 = vpop.permute.xlu0 %1201
      %1203 = vrot.lane.b32.xlu0 %v1132, 40
      %v1204 = vpop.permute.xlu0 %1203
      %1205 = vrot.lane.b32.xlu0 %v1134, 40
      %v1206 = vpop.permute.xlu0 %1205
      %1207 = vrot.lane.b32.xlu0 %v1136, 40
      %v1208 = vpop.permute.xlu0 %1207
      %1209 = vrot.lane.b32.xlu0 %v1138, 40
      %v1210 = vpop.permute.xlu0 %1209
      %1211 = vrot.lane.b32.xlu0 %v1140, 40
      %v1212 = vpop.permute.xlu0 %1211
      %1213 = vrot.lane.b32.xlu0 %v1142, 40
      %v1214 = vpop.permute.xlu0 %1213
      %1215 = vrot.lane.b32.xlu0 %v1144, 40
      %v1216 = vpop.permute.xlu0 %1215
      %1217 = vrot.lane.b32.xlu0 %v1146, 40
      %v1218 = vpop.permute.xlu0 %1217
      %1219 = vrot.lane.b32.xlu0 %v1148, 40
      %v1220 = vpop.permute.xlu0 %1219
      %1221 = vrot.lane.b32.xlu0 %v1150, 40
      %v1222 = vpop.permute.xlu0 %1221
      %1223 = vrot.lane.b32.xlu0 %v1152, 40
      %v1224 = vpop.permute.xlu0 %1223
      %1225 = vrot.lane.b32.xlu0 %v1154, 40
      %v1226 = vpop.permute.xlu0 %1225
      %1227 = vrot.lane.b32.xlu0 %v1156, 40
      %v1228 = vpop.permute.xlu0 %1227
      %1229 = vrot.lane.b32.xlu0 %v1158, 40
      %v1230 = vpop.permute.xlu0 %1229
      %1231 = vrot.lane.b32.xlu0 %v1160, 40
      %v1232 = vpop.permute.xlu0 %1231
      %1233 = vrot.lane.b32.xlu0 %v1162, 40
      %v1234 = vpop.permute.xlu0 %1233
      %1235 = vrot.lane.b32.xlu0 %v1164, 40
      %v1236 = vpop.permute.xlu0 %1235
      %1237 = vrot.lane.b32.xlu0 %v1166, 40
      %v1238 = vpop.permute.xlu0 %1237
      %1239 = vrot.lane.b32.xlu0 %v1168, 40
      %v1240 = vpop.permute.xlu0 %1239
      %1241 = vrot.lane.b32.xlu0 %v1170, 40
      %v1242 = vpop.permute.xlu0 %1241
      %1243 = vrot.lane.b32.xlu0 %v1172, 40
      %v1244 = vpop.permute.xlu0 %1243
      %1245 = vrot.lane.b32.xlu0 %v1174, 40
      %v1246 = vpop.permute.xlu0 %1245
      %1247 = vrot.lane.b32.xlu0 %v1176, 40
      %v1248 = vpop.permute.xlu0 %1247
      %v1285 = vadd.f32 %v1067, %v1178
      %v1286 = vadd.f32 %v1068, %v1180
      %v1287 = vadd.f32 %v1069, %v1182
      %v1288 = vadd.f32 %v1070, %v1184
      %v1289 = vadd.f32 %v1071, %v1186
      %v1290 = vadd.f32 %v1072, %v1188
      %v1291 = vadd.f32 %v1073, %v1190
      %v1292 = vadd.f32 %v1074, %v1192
      %v1293 = vadd.f32 %v1075, %v1194
      %v1294 = vadd.f32 %v1076, %v1196
      %v1295 = vadd.f32 %v1077, %v1198
      %v1296 = vadd.f32 %v1078, %v1200
      %v1297 = vadd.f32 %v1079, %v1202
      %v1298 = vadd.f32 %v1080, %v1204
      %v1299 = vadd.f32 %v1081, %v1206
      %v1300 = vadd.f32 %v1082, %v1208
      %v1301 = vadd.f32 %v1083, %v1210
      %v1302 = vadd.f32 %v1084, %v1212
      %v1303 = vadd.f32 %v1085, %v1214
      %v1304 = vadd.f32 %v1086, %v1216
      %v1305 = vadd.f32 %v1087, %v1218
      %v1306 = vadd.f32 %v1088, %v1220
      %v1307 = vadd.f32 %v1089, %v1222
      %v1308 = vadd.f32 %v1090, %v1224
      %v1309 = vadd.f32 %v1091, %v1226
      %v1310 = vadd.f32 %v1092, %v1228
      %v1311 = vadd.f32 %v1093, %v1230
      %v1312 = vadd.f32 %v1094, %v1232
      %v1313 = vadd.f32 %v1095, %v1234
      %v1314 = vadd.f32 %v1096, %v1236
      %v1315 = vadd.f32 %v1097, %v1238
      %v1316 = vadd.f32 %v1098, %v1240
      %v1317 = vadd.f32 %v1099, %v1242
      %v1318 = vadd.f32 %v1100, %v1244
      %v1319 = vadd.f32 %v1101, %v1246
      %v1320 = vadd.f32 %v1102, %v1248
      %v1322 = vlaneseq
      %v1323 = vshrl.u32 %v1322, 7
      %v1324 = vsub.s32 0, %v1323
      %v1325 = vrot.slane %v627, %v1324
      %1326 = vrot.lane.b32.xlu0 %v1325, 60
      %v1327 = vpop.permute.xlu0 %1326
      %v1329 = vadd.f32 %v1285, %v1327
      %v1330 = vadd.f32 %v1286, %v1327
      %v1331 = vadd.f32 %v1287, %v1327
      %v1332 = vadd.f32 %v1288, %v1327
      %v1333 = vadd.f32 %v1289, %v1327
      %v1334 = vadd.f32 %v1290, %v1327
      %v1335 = vadd.f32 %v1291, %v1327
      %v1336 = vadd.f32 %v1292, %v1327
      %v1337 = vadd.f32 %v1293, %v1327
      %v1338 = vadd.f32 %v1294, %v1327
      %v1339 = vadd.f32 %v1295, %v1327
      %v1340 = vadd.f32 %v1296, %v1327
      %v1341 = vadd.f32 %v1297, %v1327
      %v1342 = vadd.f32 %v1298, %v1327
      %v1343 = vadd.f32 %v1299, %v1327
      %v1344 = vadd.f32 %v1300, %v1327
      %v1345 = vadd.f32 %v1301, %v1327
      %v1346 = vadd.f32 %v1302, %v1327
      %v1347 = vadd.f32 %v1303, %v1327
      %v1348 = vadd.f32 %v1304, %v1327
      %v1349 = vadd.f32 %v1305, %v1327
      %v1350 = vadd.f32 %v1306, %v1327
      %v1351 = vadd.f32 %v1307, %v1327
      %v1352 = vadd.f32 %v1308, %v1327
      %v1353 = vadd.f32 %v1309, %v1327
      %v1354 = vadd.f32 %v1310, %v1327
      %v1355 = vadd.f32 %v1311, %v1327
      %v1356 = vadd.f32 %v1312, %v1327
      %v1357 = vadd.f32 %v1313, %v1327
      %v1358 = vadd.f32 %v1314, %v1327
      %v1359 = vadd.f32 %v1315, %v1327
      %v1360 = vadd.f32 %v1316, %v1327
      %v1361 = vadd.f32 %v1317, %v1327
      %v1362 = vadd.f32 %v1318, %v1327
      %v1363 = vadd.f32 %v1319, %v1327
      %v1364 = vadd.f32 %v1320, %v1327
      %v1365 = vmax.f32 %v1329, 0.0
      %v1366 = vmax.f32 %v1330, 0.0
      %v1367 = vmax.f32 %v1331, 0.0
      %v1368 = vmax.f32 %v1332, 0.0
      %v1369 = vmax.f32 %v1333, 0.0
      %v1370 = vmax.f32 %v1334, 0.0
      %v1371 = vmax.f32 %v1335, 0.0
      %v1372 = vmax.f32 %v1336, 0.0
      %v1373 = vmax.f32 %v1337, 0.0
      %v1374 = vmax.f32 %v1338, 0.0
      %v1375 = vmax.f32 %v1339, 0.0
      %v1376 = vmax.f32 %v1340, 0.0
      %v1377 = vmax.f32 %v1341, 0.0
      %v1378 = vmax.f32 %v1342, 0.0
      %v1379 = vmax.f32 %v1343, 0.0
      %v1380 = vmax.f32 %v1344, 0.0
      %v1381 = vmax.f32 %v1345, 0.0
      %v1382 = vmax.f32 %v1346, 0.0
      %v1383 = vmax.f32 %v1347, 0.0
      %v1384 = vmax.f32 %v1348, 0.0
      %v1385 = vmax.f32 %v1349, 0.0
      %v1386 = vmax.f32 %v1350, 0.0
      %v1387 = vmax.f32 %v1351, 0.0
      %v1388 = vmax.f32 %v1352, 0.0
      %v1389 = vmax.f32 %v1353, 0.0
      %v1390 = vmax.f32 %v1354, 0.0
      %v1391 = vmax.f32 %v1355, 0.0
      %v1392 = vmax.f32 %v1356, 0.0
      %v1393 = vmax.f32 %v1357, 0.0
      %v1394 = vmax.f32 %v1358, 0.0
      %v1395 = vmax.f32 %v1359, 0.0
      %v1396 = vmax.f32 %v1360, 0.0
      %v1397 = vmax.f32 %v1361, 0.0
      %v1398 = vmax.f32 %v1362, 0.0
      %v1399 = vmax.f32 %v1363, 0.0
      %v1400 = vmax.f32 %v1364, 0.0
      %1437 = vrot.lane.b32.xlu0 %v1365, 68
      %v1438 = vpop.permute.xlu0 %1437
      %1439 = vrot.lane.b32.xlu0 %v1366, 68
      %v1440 = vpop.permute.xlu0 %1439
      %1441 = vrot.lane.b32.xlu0 %v1367, 68
      %v1442 = vpop.permute.xlu0 %1441
      %1443 = vrot.lane.b32.xlu0 %v1368, 68
      %v1444 = vpop.permute.xlu0 %1443
      %1445 = vrot.lane.b32.xlu0 %v1369, 68
      %v1446 = vpop.permute.xlu0 %1445
      %1447 = vrot.lane.b32.xlu0 %v1370, 68
      %v1448 = vpop.permute.xlu0 %1447
      %1449 = vrot.lane.b32.xlu0 %v1371, 68
      %v1450 = vpop.permute.xlu0 %1449
      %1451 = vrot.lane.b32.xlu0 %v1372, 68
      %v1452 = vpop.permute.xlu0 %1451
      %1453 = vrot.lane.b32.xlu0 %v1373, 68
      %v1454 = vpop.permute.xlu0 %1453
      %1455 = vrot.lane.b32.xlu0 %v1374, 68
      %v1456 = vpop.permute.xlu0 %1455
      %1457 = vrot.lane.b32.xlu0 %v1375, 68
      %v1458 = vpop.permute.xlu0 %1457
      %1459 = vrot.lane.b32.xlu0 %v1376, 68
      %v1460 = vpop.permute.xlu0 %1459
      %1461 = vrot.lane.b32.xlu0 %v1377, 68
      %v1462 = vpop.permute.xlu0 %1461
      %1463 = vrot.lane.b32.xlu0 %v1378, 68
      %v1464 = vpop.permute.xlu0 %1463
      %1465 = vrot.lane.b32.xlu0 %v1379, 68
      %v1466 = vpop.permute.xlu0 %1465
      %1467 = vrot.lane.b32.xlu0 %v1380, 68
      %v1468 = vpop.permute.xlu0 %1467
      %1469 = vrot.lane.b32.xlu0 %v1381, 68
      %v1470 = vpop.permute.xlu0 %1469
      %1471 = vrot.lane.b32.xlu0 %v1382, 68
      %v1472 = vpop.permute.xlu0 %1471
      %1473 = vrot.lane.b32.xlu0 %v1383, 68
      %v1474 = vpop.permute.xlu0 %1473
      %1475 = vrot.lane.b32.xlu0 %v1384, 68
      %v1476 = vpop.permute.xlu0 %1475
      %1477 = vrot.lane.b32.xlu0 %v1385, 68
      %v1478 = vpop.permute.xlu0 %1477
      %1479 = vrot.lane.b32.xlu0 %v1386, 68
      %v1480 = vpop.permute.xlu0 %1479
      %1481 = vrot.lane.b32.xlu0 %v1387, 68
      %v1482 = vpop.permute.xlu0 %1481
      %1483 = vrot.lane.b32.xlu0 %v1388, 68
      %v1484 = vpop.permute.xlu0 %1483
      %1485 = vrot.lane.b32.xlu0 %v1389, 68
      %v1486 = vpop.permute.xlu0 %1485
      %1487 = vrot.lane.b32.xlu0 %v1390, 68
      %v1488 = vpop.permute.xlu0 %1487
      %1489 = vrot.lane.b32.xlu0 %v1391, 68
      %v1490 = vpop.permute.xlu0 %1489
      %1491 = vrot.lane.b32.xlu0 %v1392, 68
      %v1492 = vpop.permute.xlu0 %1491
      %1493 = vrot.lane.b32.xlu0 %v1393, 68
      %v1494 = vpop.permute.xlu0 %1493
      %1495 = vrot.lane.b32.xlu0 %v1394, 68
      %v1496 = vpop.permute.xlu0 %1495
      %1497 = vrot.lane.b32.xlu0 %v1395, 68
      %v1498 = vpop.permute.xlu0 %1497
      %1499 = vrot.lane.b32.xlu0 %v1396, 68
      %v1500 = vpop.permute.xlu0 %1499
      %1501 = vrot.lane.b32.xlu0 %v1397, 68
      %v1502 = vpop.permute.xlu0 %1501
      %1503 = vrot.lane.b32.xlu0 %v1398, 68
      %v1504 = vpop.permute.xlu0 %1503
      %1505 = vrot.lane.b32.xlu0 %v1399, 68
      %v1506 = vpop.permute.xlu0 %1505
      %1507 = vrot.lane.b32.xlu0 %v1400, 68
      %v1508 = vpop.permute.xlu0 %1507
      %1545 = vst.msk [vmem:[%s170] sm:$0xff] %vm215, %v1438
      %1546 = vst.msk [vmem:[%s170 + $0x8] sm:$0xff] %vm215, %v1440
      %1547 = vst.msk [vmem:[%s170 + $0x10] sm:$0xff] %vm215, %v1442
      %1548 = vst.msk [vmem:[%s170 + $0x18] sm:$0xff] %vm215, %v1444
      %1549 = vst.msk [vmem:[%s170 + $0x20] sm:$0xff] %vm215, %v1446
      %1550 = vst.msk [vmem:[%s170 + $0x28] sm:$0xff] %vm215, %v1448
      %1551 = vst.msk [vmem:[%s170 + $0x30] sm:$0xff] %vm215, %v1450
      %1552 = vst.msk [vmem:[%s170 + $0x38] sm:$0xff] %vm215, %v1452
      %1553 = vst.msk [vmem:[%s170 + $0x40] sm:$0xff] %vm215, %v1454
      %1554 = vst.msk [vmem:[%s170 + $0x48] sm:$0xff] %vm215, %v1456
      %1555 = vst.msk [vmem:[%s170 + $0x50] sm:$0xff] %vm215, %v1458
      %1556 = vst.msk [vmem:[%s170 + $0x58] sm:$0xff] %vm215, %v1460
      %1557 = vst.msk [vmem:[%s170 + $0x60] sm:$0xff] %vm215, %v1462
      %1558 = vst.msk [vmem:[%s170 + $0x68] sm:$0xff] %vm215, %v1464
      %1559 = vst.msk [vmem:[%s170 + $0x70] sm:$0xff] %vm215, %v1466
      %1560 = vst.msk [vmem:[%s170 + $0x78] sm:$0xff] %vm215, %v1468
      %1561 = vst.msk [vmem:[%s170 + $0x80] sm:$0xff] %vm215, %v1470
      %1562 = vst.msk [vmem:[%s170 + $0x88] sm:$0xff] %vm215, %v1472
      %1563 = vst.msk [vmem:[%s170 + $0x90] sm:$0xff] %vm215, %v1474
      %1564 = vst.msk [vmem:[%s170 + $0x98] sm:$0xff] %vm215, %v1476
      %1565 = vst.msk [vmem:[%s170 + $0xa0] sm:$0xff] %vm215, %v1478
      %1566 = vst.msk [vmem:[%s170 + $0xa8] sm:$0xff] %vm215, %v1480
      %1567 = vst.msk [vmem:[%s170 + $0xb0] sm:$0xff] %vm215, %v1482
      %1568 = vst.msk [vmem:[%s170 + $0xb8] sm:$0xff] %vm215, %v1484
      %1569 = vst.msk [vmem:[%s170 + $0xc0] sm:$0xff] %vm215, %v1486
      %1570 = vst.msk [vmem:[%s170 + $0xc8] sm:$0xff] %vm215, %v1488
      %1571 = vst.msk [vmem:[%s170 + $0xd0] sm:$0xff] %vm215, %v1490
      %1572 = vst.msk [vmem:[%s170 + $0xd8] sm:$0xff] %vm215, %v1492
      %1573 = vst.msk [vmem:[%s170 + $0xe0] sm:$0xff] %vm215, %v1494
      %1574 = vst.msk [vmem:[%s170 + $0xe8] sm:$0xff] %vm215, %v1496
      %1575 = vst.msk [vmem:[%s170 + $0xf0] sm:$0xff] %vm215, %v1498
      %1576 = vst.msk [vmem:[%s170 + $0xf8] sm:$0xff] %vm215, %v1500
      %1577 = vst.msk [vmem:[%s170 + $0x100] sm:$0xff] %vm215, %v1502
      %1578 = vst.msk [vmem:[%s170 + $0x108] sm:$0xff] %vm215, %v1504
      %1579 = vst.msk [vmem:[%s170 + $0x110] sm:$0xff] %vm215, %v1506
      %1580 = vst.msk [vmem:[%s170 + $0x118] sm:$0xff] %vm215, %v1508
      %1581 = vrot.lane.b32.xlu0 %v737, 8
      %v1582 = vpop.permute.xlu0 %1581
      %v1584 = vadd.f32 %v596, %v1582
      %1585 = vrot.lane.b32.xlu0 %v957, 32
      %v1586 = vpop.permute.xlu0 %1585
      %v1588 = vadd.f32 %v1584, %v1586
      %1589 = vrot.lane.b32.xlu0 %v1175, 40
      %v1590 = vpop.permute.xlu0 %1589
      %v1592 = vadd.f32 %v1588, %v1590
      %1593 = vrot.lane.b32.xlu0 %v1325, 56
      %v1594 = vpop.permute.xlu0 %1593
      %v1596 = vadd.f32 %v1285, %v1594
      %v1597 = vadd.f32 %v1286, %v1594
      %v1598 = vadd.f32 %v1287, %v1594
      %v1599 = vadd.f32 %v1288, %v1594
      %v1600 = vadd.f32 %v1289, %v1594
      %v1601 = vadd.f32 %v1290, %v1594
      %v1602 = vadd.f32 %v1291, %v1594
      %v1603 = vadd.f32 %v1292, %v1594
      %v1604 = vadd.f32 %v1293, %v1594
      %v1605 = vadd.f32 %v1294, %v1594
      %v1606 = vadd.f32 %v1295, %v1594
      %v1607 = vadd.f32 %v1296, %v1594
      %v1608 = vadd.f32 %v1297, %v1594
      %v1609 = vadd.f32 %v1298, %v1594
      %v1610 = vadd.f32 %v1299, %v1594
      %v1611 = vadd.f32 %v1300, %v1594
      %v1612 = vadd.f32 %v1301, %v1594
      %v1613 = vadd.f32 %v1302, %v1594
      %v1614 = vadd.f32 %v1303, %v1594
      %v1615 = vadd.f32 %v1304, %v1594
      %v1616 = vadd.f32 %v1305, %v1594
      %v1617 = vadd.f32 %v1306, %v1594
      %v1618 = vadd.f32 %v1307, %v1594
      %v1619 = vadd.f32 %v1308, %v1594
      %v1620 = vadd.f32 %v1309, %v1594
      %v1621 = vadd.f32 %v1310, %v1594
      %v1622 = vadd.f32 %v1311, %v1594
      %v1623 = vadd.f32 %v1312, %v1594
      %v1624 = vadd.f32 %v1313, %v1594
      %v1625 = vadd.f32 %v1314, %v1594
      %v1626 = vadd.f32 %v1315, %v1594
      %v1627 = vadd.f32 %v1316, %v1594
      %v1628 = vadd.f32 %v1317, %v1594
      %v1629 = vadd.f32 %v1318, %v1594
      %v1630 = vadd.f32 %v1319, %v1594
      %v1631 = vadd.f32 %v1320, %v1594
      %v1632 = vadd.f32 %v1592, %v1594
      %v1633 = vmax.f32 %v1596, 0.0
      %v1634 = vmax.f32 %v1597, 0.0
      %v1635 = vmax.f32 %v1598, 0.0
      %v1636 = vmax.f32 %v1599, 0.0
      %v1637 = vmax.f32 %v1600, 0.0
      %v1638 = vmax.f32 %v1601, 0.0
      %v1639 = vmax.f32 %v1602, 0.0
      %v1640 = vmax.f32 %v1603, 0.0
      %v1641 = vmax.f32 %v1604, 0.0
      %v1642 = vmax.f32 %v1605, 0.0
      %v1643 = vmax.f32 %v1606, 0.0
      %v1644 = vmax.f32 %v1607, 0.0
      %v1645 = vmax.f32 %v1608, 0.0
      %v1646 = vmax.f32 %v1609, 0.0
      %v1647 = vmax.f32 %v1610, 0.0
      %v1648 = vmax.f32 %v1611, 0.0
      %v1649 = vmax.f32 %v1612, 0.0
      %v1650 = vmax.f32 %v1613, 0.0
      %v1651 = vmax.f32 %v1614, 0.0
      %v1652 = vmax.f32 %v1615, 0.0
      %v1653 = vmax.f32 %v1616, 0.0
      %v1654 = vmax.f32 %v1617, 0.0
      %v1655 = vmax.f32 %v1618, 0.0
      %v1656 = vmax.f32 %v1619, 0.0
      %v1657 = vmax.f32 %v1620, 0.0
      %v1658 = vmax.f32 %v1621, 0.0
      %v1659 = vmax.f32 %v1622, 0.0
      %v1660 = vmax.f32 %v1623, 0.0
      %v1661 = vmax.f32 %v1624, 0.0
      %v1662 = vmax.f32 %v1625, 0.0
      %v1663 = vmax.f32 %v1626, 0.0
      %v1664 = vmax.f32 %v1627, 0.0
      %v1665 = vmax.f32 %v1628, 0.0
      %v1666 = vmax.f32 %v1629, 0.0
      %v1667 = vmax.f32 %v1630, 0.0
      %v1668 = vmax.f32 %v1631, 0.0
      %v1669 = vmax.f32 %v1632, 0.0
      %1707 = vrot.lane.b32.xlu0 %v1633, 76
      %v1708 = vpop.permute.xlu0 %1707
      %1709 = vrot.lane.b32.xlu0 %v1634, 76
      %v1710 = vpop.permute.xlu0 %1709
      %1711 = vrot.lane.b32.xlu0 %v1635, 76
      %v1712 = vpop.permute.xlu0 %1711
      %1713 = vrot.lane.b32.xlu0 %v1636, 76
      %v1714 = vpop.permute.xlu0 %1713
      %1715 = vrot.lane.b32.xlu0 %v1637, 76
      %v1716 = vpop.permute.xlu0 %1715
      %1717 = vrot.lane.b32.xlu0 %v1638, 76
      %v1718 = vpop.permute.xlu0 %1717
      %1719 = vrot.lane.b32.xlu0 %v1639, 76
      %v1720 = vpop.permute.xlu0 %1719
      %1721 = vrot.lane.b32.xlu0 %v1640, 76
      %v1722 = vpop.permute.xlu0 %1721
      %1723 = vrot.lane.b32.xlu0 %v1641, 76
      %v1724 = vpop.permute.xlu0 %1723
      %1725 = vrot.lane.b32.xlu0 %v1642, 76
      %v1726 = vpop.permute.xlu0 %1725
      %1727 = vrot.lane.b32.xlu0 %v1643, 76
      %v1728 = vpop.permute.xlu0 %1727
      %1729 = vrot.lane.b32.xlu0 %v1644, 76
      %v1730 = vpop.permute.xlu0 %1729
      %1731 = vrot.lane.b32.xlu0 %v1645, 76
      %v1732 = vpop.permute.xlu0 %1731
      %1733 = vrot.lane.b32.xlu0 %v1646, 76
      %v1734 = vpop.permute.xlu0 %1733
      %1735 = vrot.lane.b32.xlu0 %v1647, 76
      %v1736 = vpop.permute.xlu0 %1735
      %1737 = vrot.lane.b32.xlu0 %v1648, 76
      %v1738 = vpop.permute.xlu0 %1737
      %1739 = vrot.lane.b32.xlu0 %v1649, 76
      %v1740 = vpop.permute.xlu0 %1739
      %1741 = vrot.lane.b32.xlu0 %v1650, 76
      %v1742 = vpop.permute.xlu0 %1741
      %1743 = vrot.lane.b32.xlu0 %v1651, 76
      %v1744 = vpop.permute.xlu0 %1743
      %1745 = vrot.lane.b32.xlu0 %v1652, 76
      %v1746 = vpop.permute.xlu0 %1745
      %1747 = vrot.lane.b32.xlu0 %v1653, 76
      %v1748 = vpop.permute.xlu0 %1747
      %1749 = vrot.lane.b32.xlu0 %v1654, 76
      %v1750 = vpop.permute.xlu0 %1749
      %1751 = vrot.lane.b32.xlu0 %v1655, 76
      %v1752 = vpop.permute.xlu0 %1751
      %1753 = vrot.lane.b32.xlu0 %v1656, 76
      %v1754 = vpop.permute.xlu0 %1753
      %1755 = vrot.lane.b32.xlu0 %v1657, 76
      %v1756 = vpop.permute.xlu0 %1755
      %1757 = vrot.lane.b32.xlu0 %v1658, 76
      %v1758 = vpop.permute.xlu0 %1757
      %1759 = vrot.lane.b32.xlu0 %v1659, 76
      %v1760 = vpop.permute.xlu0 %1759
      %1761 = vrot.lane.b32.xlu0 %v1660, 76
      %v1762 = vpop.permute.xlu0 %1761
      %1763 = vrot.lane.b32.xlu0 %v1661, 76
      %v1764 = vpop.permute.xlu0 %1763
      %1765 = vrot.lane.b32.xlu0 %v1662, 76
      %v1766 = vpop.permute.xlu0 %1765
      %1767 = vrot.lane.b32.xlu0 %v1663, 76
      %v1768 = vpop.permute.xlu0 %1767
      %1769 = vrot.lane.b32.xlu0 %v1664, 76
      %v1770 = vpop.permute.xlu0 %1769
      %1771 = vrot.lane.b32.xlu0 %v1665, 76
      %v1772 = vpop.permute.xlu0 %1771
      %1773 = vrot.lane.b32.xlu0 %v1666, 76
      %v1774 = vpop.permute.xlu0 %1773
      %1775 = vrot.lane.b32.xlu0 %v1667, 76
      %v1776 = vpop.permute.xlu0 %1775
      %1777 = vrot.lane.b32.xlu0 %v1668, 76
      %v1778 = vpop.permute.xlu0 %1777
      %1779 = vrot.lane.b32.xlu0 %v1669, 76
      %v1780 = vpop.permute.xlu0 %1779
      %vm1818 = vcmask 64545
      %1819 = vst.msk [vmem:[%s170 - $0x1] sm:$0xfe] %vm1818, %v1708
      %vm1820 = vcmask 64544
      %1821 = vst.msk [vmem:[%s170 + $0x7] sm:$0xff] %vm1820, %v1710
      %1822 = vst.msk [vmem:[%s170 + $0xf] sm:$0xff] %vm1820, %v1712
      %1823 = vst.msk [vmem:[%s170 + $0x17] sm:$0xff] %vm1820, %v1714
      %1824 = vst.msk [vmem:[%s170 + $0x1f] sm:$0xff] %vm1820, %v1716
      %1825 = vst.msk [vmem:[%s170 + $0x27] sm:$0xff] %vm1820, %v1718
      %1826 = vst.msk [vmem:[%s170 + $0x2f] sm:$0xff] %vm1820, %v1720
      %1827 = vst.msk [vmem:[%s170 + $0x37] sm:$0xff] %vm1820, %v1722
      %1828 = vst.msk [vmem:[%s170 + $0x3f] sm:$0xff] %vm1820, %v1724
      %1829 = vst.msk [vmem:[%s170 + $0x47] sm:$0xff] %vm1820, %v1726
      %1830 = vst.msk [vmem:[%s170 + $0x4f] sm:$0xff] %vm1820, %v1728
      %1831 = vst.msk [vmem:[%s170 + $0x57] sm:$0xff] %vm1820, %v1730
      %1832 = vst.msk [vmem:[%s170 + $0x5f] sm:$0xff] %vm1820, %v1732
      %1833 = vst.msk [vmem:[%s170 + $0x67] sm:$0xff] %vm1820, %v1734
      %1834 = vst.msk [vmem:[%s170 + $0x6f] sm:$0xff] %vm1820, %v1736
      %1835 = vst.msk [vmem:[%s170 + $0x77] sm:$0xff] %vm1820, %v1738
      %1836 = vst.msk [vmem:[%s170 + $0x7f] sm:$0xff] %vm1820, %v1740
      %1837 = vst.msk [vmem:[%s170 + $0x87] sm:$0xff] %vm1820, %v1742
      %1838 = vst.msk [vmem:[%s170 + $0x8f] sm:$0xff] %vm1820, %v1744
      %1839 = vst.msk [vmem:[%s170 + $0x97] sm:$0xff] %vm1820, %v1746
      %1840 = vst.msk [vmem:[%s170 + $0x9f] sm:$0xff] %vm1820, %v1748
      %1841 = vst.msk [vmem:[%s170 + $0xa7] sm:$0xff] %vm1820, %v1750
      %1842 = vst.msk [vmem:[%s170 + $0xaf] sm:$0xff] %vm1820, %v1752
      %1843 = vst.msk [vmem:[%s170 + $0xb7] sm:$0xff] %vm1820, %v1754
      %1844 = vst.msk [vmem:[%s170 + $0xbf] sm:$0xff] %vm1820, %v1756
      %1845 = vst.msk [vmem:[%s170 + $0xc7] sm:$0xff] %vm1820, %v1758
      %1846 = vst.msk [vmem:[%s170 + $0xcf] sm:$0xff] %vm1820, %v1760
      %1847 = vst.msk [vmem:[%s170 + $0xd7] sm:$0xff] %vm1820, %v1762
      %1848 = vst.msk [vmem:[%s170 + $0xdf] sm:$0xff] %vm1820, %v1764
      %1849 = vst.msk [vmem:[%s170 + $0xe7] sm:$0xff] %vm1820, %v1766
      %1850 = vst.msk [vmem:[%s170 + $0xef] sm:$0xff] %vm1820, %v1768
      %1851 = vst.msk [vmem:[%s170 + $0xf7] sm:$0xff] %vm1820, %v1770
      %1852 = vst.msk [vmem:[%s170 + $0xff] sm:$0xff] %vm1820, %v1772
      %1853 = vst.msk [vmem:[%s170 + $0x107] sm:$0xff] %vm1820, %v1774
      %1854 = vst.msk [vmem:[%s170 + $0x10f] sm:$0xff] %vm1820, %v1776
      %1855 = vst.msk [vmem:[%s170 + $0x117] sm:$0xff] %vm1820, %v1778
      %vm1856 = vcmask 57376
      %1857 = vst.msk [vmem:[%s170 + $0x11f] sm:$0x1] %vm1856, %v1780
      %v1858 = vrot.slane %v601, 1
      %v1859 = vsel %vm665, %v737, %v1858
      %v1860 = vrot.slane %v606, 1
      %v1861 = vsel %vm665, %v1858, %v1860
      %1862 = vrot.lane.b32.xlu0 %v1859, 8
      %v1863 = vpop.permute.xlu0 %1862
      %1864 = vrot.lane.b32.xlu0 %v1861, 8
      %v1865 = vpop.permute.xlu0 %1864
      %1866 = vrot.lane.b32.xlu0 %v1860, 8
      %v1867 = vpop.permute.xlu0 %1866
      %v1871 = vadd.f32 %v596, %v1863
      %v1872 = vadd.f32 %v601, %v1865
      %v1873 = vadd.f32 %v606, %v1867
      %v1876 = vrot.slane %v611, 2
      %v1877 = vsel %vm885, %v957, %v1876
      %v1878 = vrot.slane %v616, 2
      %v1879 = vsel %vm885, %v1876, %v1878
      %1880 = vrot.lane.b32.xlu0 %v1877, 32
      %v1881 = vpop.permute.xlu0 %1880
      %1882 = vrot.lane.b32.xlu0 %v1879, 32
      %v1883 = vpop.permute.xlu0 %1882
      %1884 = vrot.lane.b32.xlu0 %v1878, 32
      %v1885 = vpop.permute.xlu0 %1884
      %v1889 = vadd.f32 %v1871, %v1881
      %v1890 = vadd.f32 %v1872, %v1883
      %v1891 = vadd.f32 %v1873, %v1885
      %v1892 = vrot.slane %v611, 3
      %v1893 = vsel %vm1103, %v1175, %v1892
      %v1894 = vrot.slane %v616, 3
      %v1895 = vsel %vm1103, %v1892, %v1894
      %1896 = vrot.lane.b32.xlu0 %v1893, 40
      %v1897 = vpop.permute.xlu0 %1896
      %1898 = vrot.lane.b32.xlu0 %v1895, 40
      %v1899 = vpop.permute.xlu0 %1898
      %1900 = vrot.lane.b32.xlu0 %v1894, 40
      %v1901 = vpop.permute.xlu0 %1900
      %v1905 = vadd.f32 %v1889, %v1897
      %v1906 = vadd.f32 %v1890, %v1899
      %v1907 = vadd.f32 %v1891, %v1901
      %1908 = vrot.lane.b32.xlu0 %v1325, 44
      %v1909 = vpop.permute.xlu0 %1908
      %v1911 = vadd.f32 %v1287, %v1909
      %v1912 = vadd.f32 %v1288, %v1909
      %v1913 = vadd.f32 %v1289, %v1909
      %v1914 = vadd.f32 %v1290, %v1909
      %v1915 = vadd.f32 %v1291, %v1909
      %v1916 = vadd.f32 %v1292, %v1909
      %v1917 = vadd.f32 %v1293, %v1909
      %v1918 = vadd.f32 %v1294, %v1909
      %v1919 = vadd.f32 %v1295, %v1909
      %v1920 = vadd.f32 %v1296, %v1909
      %v1921 = vadd.f32 %v1297, %v1909
      %v1922 = vadd.f32 %v1298, %v1909
      %v1923 = vadd.f32 %v1299, %v1909
      %v1924 = vadd.f32 %v1300, %v1909
      %v1925 = vadd.f32 %v1301, %v1909
      %v1926 = vadd.f32 %v1302, %v1909
      %v1927 = vadd.f32 %v1303, %v1909
      %v1928 = vadd.f32 %v1304, %v1909
      %v1929 = vadd.f32 %v1305, %v1909
      %v1930 = vadd.f32 %v1306, %v1909
      %v1931 = vadd.f32 %v1307, %v1909
      %v1932 = vadd.f32 %v1308, %v1909
      %v1933 = vadd.f32 %v1309, %v1909
      %v1934 = vadd.f32 %v1310, %v1909
      %v1935 = vadd.f32 %v1311, %v1909
      %v1936 = vadd.f32 %v1312, %v1909
      %v1937 = vadd.f32 %v1313, %v1909
      %v1938 = vadd.f32 %v1314, %v1909
      %v1939 = vadd.f32 %v1315, %v1909
      %v1940 = vadd.f32 %v1316, %v1909
      %v1941 = vadd.f32 %v1317, %v1909
      %v1942 = vadd.f32 %v1318, %v1909
      %v1943 = vadd.f32 %v1319, %v1909
      %v1944 = vadd.f32 %v1320, %v1909
      %v1945 = vadd.f32 %v1905, %v1909
      %v1946 = vadd.f32 %v1906, %v1909
      %v1947 = vadd.f32 %v1907, %v1909
      %v1948 = vmax.f32 %v1911, 0.0
      %v1949 = vmax.f32 %v1912, 0.0
      %v1950 = vmax.f32 %v1913, 0.0
      %v1951 = vmax.f32 %v1914, 0.0
      %v1952 = vmax.f32 %v1915, 0.0
      %v1953 = vmax.f32 %v1916, 0.0
      %v1954 = vmax.f32 %v1917, 0.0
      %v1955 = vmax.f32 %v1918, 0.0
      %v1956 = vmax.f32 %v1919, 0.0
      %v1957 = vmax.f32 %v1920, 0.0
      %v1958 = vmax.f32 %v1921, 0.0
      %v1959 = vmax.f32 %v1922, 0.0
      %v1960 = vmax.f32 %v1923, 0.0
      %v1961 = vmax.f32 %v1924, 0.0
      %v1962 = vmax.f32 %v1925, 0.0
      %v1963 = vmax.f32 %v1926, 0.0
      %v1964 = vmax.f32 %v1927, 0.0
      %v1965 = vmax.f32 %v1928, 0.0
      %v1966 = vmax.f32 %v1929, 0.0
      %v1967 = vmax.f32 %v1930, 0.0
      %v1968 = vmax.f32 %v1931, 0.0
      %v1969 = vmax.f32 %v1932, 0.0
      %v1970 = vmax.f32 %v1933, 0.0
      %v1971 = vmax.f32 %v1934, 0.0
      %v1972 = vmax.f32 %v1935, 0.0
      %v1973 = vmax.f32 %v1936, 0.0
      %v1974 = vmax.f32 %v1937, 0.0
      %v1975 = vmax.f32 %v1938, 0.0
      %v1976 = vmax.f32 %v1939, 0.0
      %v1977 = vmax.f32 %v1940, 0.0
      %v1978 = vmax.f32 %v1941, 0.0
      %v1979 = vmax.f32 %v1942, 0.0
      %v1980 = vmax.f32 %v1943, 0.0
      %v1981 = vmax.f32 %v1944, 0.0
      %v1982 = vmax.f32 %v1945, 0.0
      %v1983 = vmax.f32 %v1946, 0.0
      %v1984 = vmax.f32 %v1947, 0.0
      %2022 = vrot.lane.b32.xlu0 %v1948, 92
      %v2023 = vpop.permute.xlu0 %2022
      %2024 = vrot.lane.b32.xlu0 %v1949, 92
      %v2025 = vpop.permute.xlu0 %2024
      %2026 = vrot.lane.b32.xlu0 %v1950, 92
      %v2027 = vpop.permute.xlu0 %2026
      %2028 = vrot.lane.b32.xlu0 %v1951, 92
      %v2029 = vpop.permute.xlu0 %2028
      %2030 = vrot.lane.b32.xlu0 %v1952, 92
      %v2031 = vpop.permute.xlu0 %2030
      %2032 = vrot.lane.b32.xlu0 %v1953, 92
      %v2033 = vpop.permute.xlu0 %2032
      %2034 = vrot.lane.b32.xlu0 %v1954, 92
      %v2035 = vpop.permute.xlu0 %2034
      %2036 = vrot.lane.b32.xlu0 %v1955, 92
      %v2037 = vpop.permute.xlu0 %2036
      %2038 = vrot.lane.b32.xlu0 %v1956, 92
      %v2039 = vpop.permute.xlu0 %2038
      %2040 = vrot.lane.b32.xlu0 %v1957, 92
      %v2041 = vpop.permute.xlu0 %2040
      %2042 = vrot.lane.b32.xlu0 %v1958, 92
      %v2043 = vpop.permute.xlu0 %2042
      %2044 = vrot.lane.b32.xlu0 %v1959, 92
      %v2045 = vpop.permute.xlu0 %2044
      %2046 = vrot.lane.b32.xlu0 %v1960, 92
      %v2047 = vpop.permute.xlu0 %2046
      %2048 = vrot.lane.b32.xlu0 %v1961, 92
      %v2049 = vpop.permute.xlu0 %2048
      %2050 = vrot.lane.b32.xlu0 %v1962, 92
      %v2051 = vpop.permute.xlu0 %2050
      %2052 = vrot.lane.b32.xlu0 %v1963, 92
      %v2053 = vpop.permute.xlu0 %2052
      %2054 = vrot.lane.b32.xlu0 %v1964, 92
      %v2055 = vpop.permute.xlu0 %2054
      %2056 = vrot.lane.b32.xlu0 %v1965, 92
      %v2057 = vpop.permute.xlu0 %2056
      %2058 = vrot.lane.b32.xlu0 %v1966, 92
      %v2059 = vpop.permute.xlu0 %2058
      %2060 = vrot.lane.b32.xlu0 %v1967, 92
      %v2061 = vpop.permute.xlu0 %2060
      %2062 = vrot.lane.b32.xlu0 %v1968, 92
      %v2063 = vpop.permute.xlu0 %2062
      %2064 = vrot.lane.b32.xlu0 %v1969, 92
      %v2065 = vpop.permute.xlu0 %2064
      %2066 = vrot.lane.b32.xlu0 %v1970, 92
      %v2067 = vpop.permute.xlu0 %2066
      %2068 = vrot.lane.b32.xlu0 %v1971, 92
      %v2069 = vpop.permute.xlu0 %2068
      %2070 = vrot.lane.b32.xlu0 %v1972, 92
      %v2071 = vpop.permute.xlu0 %2070
      %2072 = vrot.lane.b32.xlu0 %v1973, 92
      %v2073 = vpop.permute.xlu0 %2072
      %2074 = vrot.lane.b32.xlu0 %v1974, 92
      %v2075 = vpop.permute.xlu0 %2074
      %2076 = vrot.lane.b32.xlu0 %v1975, 92
      %v2077 = vpop.permute.xlu0 %2076
      %2078 = vrot.lane.b32.xlu0 %v1976, 92
      %v2079 = vpop.permute.xlu0 %2078
      %2080 = vrot.lane.b32.xlu0 %v1977, 92
      %v2081 = vpop.permute.xlu0 %2080
      %2082 = vrot.lane.b32.xlu0 %v1978, 92
      %v2083 = vpop.permute.xlu0 %2082
      %2084 = vrot.lane.b32.xlu0 %v1979, 92
      %v2085 = vpop.permute.xlu0 %2084
      %2086 = vrot.lane.b32.xlu0 %v1980, 92
      %v2087 = vpop.permute.xlu0 %2086
      %2088 = vrot.lane.b32.xlu0 %v1981, 92
      %v2089 = vpop.permute.xlu0 %2088
      %2090 = vrot.lane.b32.xlu0 %v1982, 92
      %v2091 = vpop.permute.xlu0 %2090
      %2092 = vrot.lane.b32.xlu0 %v1983, 92
      %v2093 = vpop.permute.xlu0 %2092
      %2094 = vrot.lane.b32.xlu0 %v1984, 92
      %v2095 = vpop.permute.xlu0 %2094
      %vm2133 = vcmask 97346
      %2134 = vst.msk [vmem:[%s170 - $0x2] sm:$0xfc] %vm2133, %v2023
      %vm2135 = vcmask 97344
      %2136 = vst.msk [vmem:[%s170 + $0x6] sm:$0xff] %vm2135, %v2025
      %2137 = vst.msk [vmem:[%s170 + $0xe] sm:$0xff] %vm2135, %v2027
      %2138 = vst.msk [vmem:[%s170 + $0x16] sm:$0xff] %vm2135, %v2029
      %2139 = vst.msk [vmem:[%s170 + $0x1e] sm:$0xff] %vm2135, %v2031
      %2140 = vst.msk [vmem:[%s170 + $0x26] sm:$0xff] %vm2135, %v2033
      %2141 = vst.msk [vmem:[%s170 + $0x2e] sm:$0xff] %vm2135, %v2035
      %2142 = vst.msk [vmem:[%s170 + $0x36] sm:$0xff] %vm2135, %v2037
      %2143 = vst.msk [vmem:[%s170 + $0x3e] sm:$0xff] %vm2135, %v2039
      %2144 = vst.msk [vmem:[%s170 + $0x46] sm:$0xff] %vm2135, %v2041
      %2145 = vst.msk [vmem:[%s170 + $0x4e] sm:$0xff] %vm2135, %v2043
      %2146 = vst.msk [vmem:[%s170 + $0x56] sm:$0xff] %vm2135, %v2045
      %2147 = vst.msk [vmem:[%s170 + $0x5e] sm:$0xff] %vm2135, %v2047
      %2148 = vst.msk [vmem:[%s170 + $0x66] sm:$0xff] %vm2135, %v2049
      %2149 = vst.msk [vmem:[%s170 + $0x6e] sm:$0xff] %vm2135, %v2051
      %2150 = vst.msk [vmem:[%s170 + $0x76] sm:$0xff] %vm2135, %v2053
      %2151 = vst.msk [vmem:[%s170 + $0x7e] sm:$0xff] %vm2135, %v2055
      %2152 = vst.msk [vmem:[%s170 + $0x86] sm:$0xff] %vm2135, %v2057
      %2153 = vst.msk [vmem:[%s170 + $0x8e] sm:$0xff] %vm2135, %v2059
      %2154 = vst.msk [vmem:[%s170 + $0x96] sm:$0xff] %vm2135, %v2061
      %2155 = vst.msk [vmem:[%s170 + $0x9e] sm:$0xff] %vm2135, %v2063
      %2156 = vst.msk [vmem:[%s170 + $0xa6] sm:$0xff] %vm2135, %v2065
      %2157 = vst.msk [vmem:[%s170 + $0xae] sm:$0xff] %vm2135, %v2067
      %2158 = vst.msk [vmem:[%s170 + $0xb6] sm:$0xff] %vm2135, %v2069
      %2159 = vst.msk [vmem:[%s170 + $0xbe] sm:$0xff] %vm2135, %v2071
      %2160 = vst.msk [vmem:[%s170 + $0xc6] sm:$0xff] %vm2135, %v2073
      %2161 = vst.msk [vmem:[%s170 + $0xce] sm:$0xff] %vm2135, %v2075
      %2162 = vst.msk [vmem:[%s170 + $0xd6] sm:$0xff] %vm2135, %v2077
      %2163 = vst.msk [vmem:[%s170 + $0xde] sm:$0xff] %vm2135, %v2079
      %2164 = vst.msk [vmem:[%s170 + $0xe6] sm:$0xff] %vm2135, %v2081
      %2165 = vst.msk [vmem:[%s170 + $0xee] sm:$0xff] %vm2135, %v2083
      %2166 = vst.msk [vmem:[%s170 + $0xf6] sm:$0xff] %vm2135, %v2085
      %2167 = vst.msk [vmem:[%s170 + $0xfe] sm:$0xff] %vm2135, %v2087
      %2168 = vst.msk [vmem:[%s170 + $0x106] sm:$0xff] %vm2135, %v2089
      %2169 = vst.msk [vmem:[%s170 + $0x10e] sm:$0xff] %vm2135, %v2091
      %2170 = vst.msk [vmem:[%s170 + $0x116] sm:$0xff] %vm2135, %v2093
      %vm2171 = vcmask 91200
      %2172 = vst.msk [vmem:[%s170 + $0x11e] sm:$0x3] %vm2171, %v2095
      %2173 = vrot.lane.b32.xlu0 %v1325, 40
      %v2174 = vpop.permute.xlu0 %2173
      %v2176 = vadd.f32 %v1287, %v2174
      %v2177 = vadd.f32 %v1288, %v2174
      %v2178 = vadd.f32 %v1289, %v2174
      %v2179 = vadd.f32 %v1290, %v2174
      %v2180 = vadd.f32 %v1291, %v2174
      %v2181 = vadd.f32 %v1292, %v2174
      %v2182 = vadd.f32 %v1293, %v2174
      %v2183 = vadd.f32 %v1294, %v2174
      %v2184 = vadd.f32 %v1295, %v2174
      %v2185 = vadd.f32 %v1296, %v2174
      %v2186 = vadd.f32 %v1297, %v2174
      %v2187 = vadd.f32 %v1298, %v2174
      %v2188 = vadd.f32 %v1299, %v2174
      %v2189 = vadd.f32 %v1300, %v2174
      %v2190 = vadd.f32 %v1301, %v2174
      %v2191 = vadd.f32 %v1302, %v2174
      %v2192 = vadd.f32 %v1303, %v2174
      %v2193 = vadd.f32 %v1304, %v2174
      %v2194 = vadd.f32 %v1305, %v2174
      %v2195 = vadd.f32 %v1306, %v2174
      %v2196 = vadd.f32 %v1307, %v2174
      %v2197 = vadd.f32 %v1308, %v2174
      %v2198 = vadd.f32 %v1309, %v2174
      %v2199 = vadd.f32 %v1310, %v2174
      %v2200 = vadd.f32 %v1311, %v2174
      %v2201 = vadd.f32 %v1312, %v2174
      %v2202 = vadd.f32 %v1313, %v2174
      %v2203 = vadd.f32 %v1314, %v2174
      %v2204 = vadd.f32 %v1315, %v2174
      %v2205 = vadd.f32 %v1316, %v2174
      %v2206 = vadd.f32 %v1317, %v2174
      %v2207 = vadd.f32 %v1318, %v2174
      %v2208 = vadd.f32 %v1319, %v2174
      %v2209 = vadd.f32 %v1320, %v2174
      %v2210 = vadd.f32 %v1905, %v2174
      %v2211 = vadd.f32 %v1906, %v2174
      %v2212 = vadd.f32 %v1907, %v2174
      %v2213 = vmax.f32 %v2176, 0.0
      %v2214 = vmax.f32 %v2177, 0.0
      %v2215 = vmax.f32 %v2178, 0.0
      %v2216 = vmax.f32 %v2179, 0.0
      %v2217 = vmax.f32 %v2180, 0.0
      %v2218 = vmax.f32 %v2181, 0.0
      %v2219 = vmax.f32 %v2182, 0.0
      %v2220 = vmax.f32 %v2183, 0.0
      %v2221 = vmax.f32 %v2184, 0.0
      %v2222 = vmax.f32 %v2185, 0.0
      %v2223 = vmax.f32 %v2186, 0.0
      %v2224 = vmax.f32 %v2187, 0.0
      %v2225 = vmax.f32 %v2188, 0.0
      %v2226 = vmax.f32 %v2189, 0.0
      %v2227 = vmax.f32 %v2190, 0.0
      %v2228 = vmax.f32 %v2191, 0.0
      %v2229 = vmax.f32 %v2192, 0.0
      %v2230 = vmax.f32 %v2193, 0.0
      %v2231 = vmax.f32 %v2194, 0.0
      %v2232 = vmax.f32 %v2195, 0.0
      %v2233 = vmax.f32 %v2196, 0.0
      %v2234 = vmax.f32 %v2197, 0.0
      %v2235 = vmax.f32 %v2198, 0.0
      %v2236 = vmax.f32 %v2199, 0.0
      %v2237 = vmax.f32 %v2200, 0.0
      %v2238 = vmax.f32 %v2201, 0.0
      %v2239 = vmax.f32 %v2202, 0.0
      %v2240 = vmax.f32 %v2203, 0.0
      %v2241 = vmax.f32 %v2204, 0.0
      %v2242 = vmax.f32 %v2205, 0.0
      %v2243 = vmax.f32 %v2206, 0.0
      %v2244 = vmax.f32 %v2207, 0.0
      %v2245 = vmax.f32 %v2208, 0.0
      %v2246 = vmax.f32 %v2209, 0.0
      %v2247 = vmax.f32 %v2210, 0.0
      %v2248 = vmax.f32 %v2211, 0.0
      %v2249 = vmax.f32 %v2212, 0.0
      %2287 = vrot.lane.b32.xlu0 %v2213, 100
      %v2288 = vpop.permute.xlu0 %2287
      %2289 = vrot.lane.b32.xlu0 %v2214, 100
      %v2290 = vpop.permute.xlu0 %2289
      %2291 = vrot.lane.b32.xlu0 %v2215, 100
      %v2292 = vpop.permute.xlu0 %2291
      %2293 = vrot.lane.b32.xlu0 %v2216, 100
      %v2294 = vpop.permute.xlu0 %2293
      %2295 = vrot.lane.b32.xlu0 %v2217, 100
      %v2296 = vpop.permute.xlu0 %2295
      %2297 = vrot.lane.b32.xlu0 %v2218, 100
      %v2298 = vpop.permute.xlu0 %2297
      %2299 = vrot.lane.b32.xlu0 %v2219, 100
      %v2300 = vpop.permute.xlu0 %2299
      %2301 = vrot.lane.b32.xlu0 %v2220, 100
      %v2302 = vpop.permute.xlu0 %2301
      %2303 = vrot.lane.b32.xlu0 %v2221, 100
      %v2304 = vpop.permute.xlu0 %2303
      %2305 = vrot.lane.b32.xlu0 %v2222, 100
      %v2306 = vpop.permute.xlu0 %2305
      %2307 = vrot.lane.b32.xlu0 %v2223, 100
      %v2308 = vpop.permute.xlu0 %2307
      %2309 = vrot.lane.b32.xlu0 %v2224, 100
      %v2310 = vpop.permute.xlu0 %2309
      %2311 = vrot.lane.b32.xlu0 %v2225, 100
      %v2312 = vpop.permute.xlu0 %2311
      %2313 = vrot.lane.b32.xlu0 %v2226, 100
      %v2314 = vpop.permute.xlu0 %2313
      %2315 = vrot.lane.b32.xlu0 %v2227, 100
      %v2316 = vpop.permute.xlu0 %2315
      %2317 = vrot.lane.b32.xlu0 %v2228, 100
      %v2318 = vpop.permute.xlu0 %2317
      %2319 = vrot.lane.b32.xlu0 %v2229, 100
      %v2320 = vpop.permute.xlu0 %2319
      %2321 = vrot.lane.b32.xlu0 %v2230, 100
      %v2322 = vpop.permute.xlu0 %2321
      %2323 = vrot.lane.b32.xlu0 %v2231, 100
      %v2324 = vpop.permute.xlu0 %2323
      %2325 = vrot.lane.b32.xlu0 %v2232, 100
      %v2326 = vpop.permute.xlu0 %2325
      %2327 = vrot.lane.b32.xlu0 %v2233, 100
      %v2328 = vpop.permute.xlu0 %2327
      %2329 = vrot.lane.b32.xlu0 %v2234, 100
      %v2330 = vpop.permute.xlu0 %2329
      %2331 = vrot.lane.b32.xlu0 %v2235, 100
      %v2332 = vpop.permute.xlu0 %2331
      %2333 = vrot.lane.b32.xlu0 %v2236, 100
      %v2334 = vpop.permute.xlu0 %2333
      %2335 = vrot.lane.b32.xlu0 %v2237, 100
      %v2336 = vpop.permute.xlu0 %2335
      %2337 = vrot.lane.b32.xlu0 %v2238, 100
      %v2338 = vpop.permute.xlu0 %2337
      %2339 = vrot.lane.b32.xlu0 %v2239, 100
      %v2340 = vpop.permute.xlu0 %2339
      %2341 = vrot.lane.b32.xlu0 %v2240, 100
      %v2342 = vpop.permute.xlu0 %2341
      %2343 = vrot.lane.b32.xlu0 %v2241, 100
      %v2344 = vpop.permute.xlu0 %2343
      %2345 = vrot.lane.b32.xlu0 %v2242, 100
      %v2346 = vpop.permute.xlu0 %2345
      %2347 = vrot.lane.b32.xlu0 %v2243, 100
      %v2348 = vpop.permute.xlu0 %2347
      %2349 = vrot.lane.b32.xlu0 %v2244, 100
      %v2350 = vpop.permute.xlu0 %2349
      %2351 = vrot.lane.b32.xlu0 %v2245, 100
      %v2352 = vpop.permute.xlu0 %2351
      %2353 = vrot.lane.b32.xlu0 %v2246, 100
      %v2354 = vpop.permute.xlu0 %2353
      %2355 = vrot.lane.b32.xlu0 %v2247, 100
      %v2356 = vpop.permute.xlu0 %2355
      %2357 = vrot.lane.b32.xlu0 %v2248, 100
      %v2358 = vpop.permute.xlu0 %2357
      %2359 = vrot.lane.b32.xlu0 %v2249, 100
      %v2360 = vpop.permute.xlu0 %2359
      %vm2398 = vcmask 130147
      %2399 = vst.msk [vmem:[%s170 - $0x3] sm:$0xf8] %vm2398, %v2288
      %vm2400 = vcmask 130144
      %2401 = vst.msk [vmem:[%s170 + $0x5] sm:$0xff] %vm2400, %v2290
      %2402 = vst.msk [vmem:[%s170 + $0xd] sm:$0xff] %vm2400, %v2292
      %2403 = vst.msk [vmem:[%s170 + $0x15] sm:$0xff] %vm2400, %v2294
      %2404 = vst.msk [vmem:[%s170 + $0x1d] sm:$0xff] %vm2400, %v2296
      %2405 = vst.msk [vmem:[%s170 + $0x25] sm:$0xff] %vm2400, %v2298
      %2406 = vst.msk [vmem:[%s170 + $0x2d] sm:$0xff] %vm2400, %v2300
      %2407 = vst.msk [vmem:[%s170 + $0x35] sm:$0xff] %vm2400, %v2302
      %2408 = vst.msk [vmem:[%s170 + $0x3d] sm:$0xff] %vm2400, %v2304
      %2409 = vst.msk [vmem:[%s170 + $0x45] sm:$0xff] %vm2400, %v2306
      %2410 = vst.msk [vmem:[%s170 + $0x4d] sm:$0xff] %vm2400, %v2308
      %2411 = vst.msk [vmem:[%s170 + $0x55] sm:$0xff] %vm2400, %v2310
      %2412 = vst.msk [vmem:[%s170 + $0x5d] sm:$0xff] %vm2400, %v2312
      %2413 = vst.msk [vmem:[%s170 + $0x65] sm:$0xff] %vm2400, %v2314
      %2414 = vst.msk [vmem:[%s170 + $0x6d] sm:$0xff] %vm2400, %v2316
      %2415 = vst.msk [vmem:[%s170 + $0x75] sm:$0xff] %vm2400, %v2318
      %2416 = vst.msk [vmem:[%s170 + $0x7d] sm:$0xff] %vm2400, %v2320
      %2417 = vst.msk [vmem:[%s170 + $0x85] sm:$0xff] %vm2400, %v2322
      %2418 = vst.msk [vmem:[%s170 + $0x8d] sm:$0xff] %vm2400, %v2324
      %2419 = vst.msk [vmem:[%s170 + $0x95] sm:$0xff] %vm2400, %v2326
      %2420 = vst.msk [vmem:[%s170 + $0x9d] sm:$0xff] %vm2400, %v2328
      %2421 = vst.msk [vmem:[%s170 + $0xa5] sm:$0xff] %vm2400, %v2330
      %2422 = vst.msk [vmem:[%s170 + $0xad] sm:$0xff] %vm2400, %v2332
      %2423 = vst.msk [vmem:[%s170 + $0xb5] sm:$0xff] %vm2400, %v2334
      %2424 = vst.msk [vmem:[%s170 + $0xbd] sm:$0xff] %vm2400, %v2336
      %2425 = vst.msk [vmem:[%s170 + $0xc5] sm:$0xff] %vm2400, %v2338
      %2426 = vst.msk [vmem:[%s170 + $0xcd] sm:$0xff] %vm2400, %v2340
      %2427 = vst.msk [vmem:[%s170 + $0xd5] sm:$0xff] %vm2400, %v2342
      %2428 = vst.msk [vmem:[%s170 + $0xdd] sm:$0xff] %vm2400, %v2344
      %2429 = vst.msk [vmem:[%s170 + $0xe5] sm:$0xff] %vm2400, %v2346
      %2430 = vst.msk [vmem:[%s170 + $0xed] sm:$0xff] %vm2400, %v2348
      %2431 = vst.msk [vmem:[%s170 + $0xf5] sm:$0xff] %vm2400, %v2350
      %2432 = vst.msk [vmem:[%s170 + $0xfd] sm:$0xff] %vm2400, %v2352
      %2433 = vst.msk [vmem:[%s170 + $0x105] sm:$0xff] %vm2400, %v2354
      %2434 = vst.msk [vmem:[%s170 + $0x10d] sm:$0xff] %vm2400, %v2356
      %2435 = vst.msk [vmem:[%s170 + $0x115] sm:$0xff] %vm2400, %v2358
      %vm2436 = vcmask 125024
      %2437 = vst.msk [vmem:[%s170 + $0x11d] sm:$0x7] %vm2436, %v2360
      %p2438 = scmp.lt.s32.totalorder %s14, 1
      %s2439 = scalar_select %p2438, %s14, 1
      %s2440 = smul.addr %s2439, 36
      %s2441 = smul.addr %s2440, 8
      %s2442 = scalar_lea.vmem %s3, %s2441
      // Predicated region
      $region33: #{tpu_custom_call.1} parent=31 // pred_check
        %p2443 = pneg %p100
      $region34: #{tpu_custom_call.1} parent=31 // pred_check_branch
        %2445 = sbr.rel (%p2443) target = $region36
      $region35: #{tpu_custom_call.1} parent=31 // pred_region
        _
      $region36: #{tpu_custom_call.1} parent=31 // pred_fallthru
        _
    $region32: #{tpu_custom_call.1} parent=5 // pred_fallthru
      _
    %p2446 = scmp.le.s32.totalorder 2, %s9
    // Predicated region
    $region37: #{tpu_custom_call.1} parent=5 // pred_check
      %p2447 = pneg %p2446
    $region38: #{tpu_custom_call.1} parent=5 // pred_check_branch
      %2449 = sbr.rel (%p2447) target = $region40
    $region39: #{tpu_custom_call.1} parent=5 // pred_region
      %s2450 = ssub.s32 %s9, 2
      // Predicated region
      $region41: #{tpu_custom_call.1} parent=39 // pred_check
        %p2451 = pneg %p106
      $region42: #{tpu_custom_call.1} parent=39 // pred_check_branch
        %2453 = sbr.rel (%p2451) target = $region44
      $region43: #{tpu_custom_call.1} parent=39 // pred_region
        %p2454 = scmp.lt.s32.totalorder %s15, 1
        %s2455 = scalar_select %p2454, %s15, 1
        %s2456 = smul.addr %s2455, 36
        %s2457 = smul.addr %s2456, 8
        %s2458 = scalar_lea.vmem %s3, %s2457
      $region44: #{tpu_custom_call.1} parent=39 // pred_fallthru
        _
    $region40: #{tpu_custom_call.1} parent=5 // pred_fallthru
      _
  $region6: #{tpu_custom_call.1} parent=0 // loop_footer
    %s13 = sadd.s32 1, %s9
  $region7: #{tpu_custom_call.1} parent=0 // loop_footer_branch
    %8 = sbr.rel target = $region3
  $region8: #{tpu_custom_call.1} parent=0 // loop_exit
    _

</llo_original>
